<compile_context>
chip_gen: v6e
topology: v6e:2x2x1
jax: 0.10.0
libtpu: 0.0.40
codegen_flags: <defaults>
</compile_context>

<pallas_src>
import math

import jax
import jax.numpy as jnp
import numpy as np
from jax import lax
from jax.experimental import pallas as pl
from jax.experimental.pallas import tpu as pltpu


def _double_conv_kernel(xa_ref, xb_ref, wb1_ref, b1_ref, wb2_ref, b2_ref, o_ref,
                        xw_ref, acc1_ref, acc2_ref):
    """One (batch, H-tile) per grid step.

    xa_ref : (1, TH, W*Cin)      bf16  non-overlapping body rows of the zero-padded input
    xb_ref : (1, 8,  W*Cin)      bf16  aligned halo block at the next tile boundary
                                        (only its first 4 rows are meaningful)
    wb1_ref: (3, W*Cin, W*Cout)  bf16  banded conv1 weights (BN1 scale folded in)
    b1_ref : (1, W*Cout)         f32   BN1 shift, tiled over W
    wb2_ref: (3, W*Cout, W*Cout) bf16  banded conv2 weights (BN2 scale folded in)
    b2_ref : (1, W*Cout)         f32   BN2 shift, tiled over W
    o_ref  : (1, TH, W*Cout)     bf16  output rows (lane-dense: last dim = W*Cout)
    xw_ref : (TH+8, W*Cin)       bf16  scratch: assembled input window (rows 0..TH+3 used)
    acc1_ref/acc2_ref            f32   scratch accumulators (in-place MXU accumulation)
    """
    TH = o_ref.shape[1]
    t = pl.program_id(1)
    H_total = pl.num_programs(1) * TH

    # Assemble the (TH+4)-row input window from the two aligned blocks.
    xw_ref[0:TH, :] = xa_ref[0]
    xw_ref[TH:TH + 8, :] = xb_ref[0]
    xp = xw_ref[...]                                   # (TH+8, W*Cin) bf16

    # ---- conv1 + BN1: intermediate rows m = 0..TH+1  (global row = t*TH - 1 + m) ------
    # Accumulator starts at the folded BN1 shift (no separate scale/shift pass).
    acc1_ref[...] = jnp.broadcast_to(b1_ref[...], acc1_ref.shape)
    for dh in range(3):                                # 3 MXU matmuls, K = W*Cin
        acc1_ref[...] += jnp.dot(xp[dh:dh + TH + 2, :], wb1_ref[dh],
                                 preferred_element_type=jnp.float32)
    y = jnp.maximum(acc1_ref[...], 0.0)                # ReLU in f32

    # Intermediate rows outside the image are conv2's zero padding (ReLU(shift) != 0).
    m_ids = lax.broadcasted_iota(jnp.int32, (TH + 2, 1), 0)
    g_row = t * TH - 1 + m_ids
    valid = (g_row >= 0) & (g_row < H_total)
    mid = jnp.where(valid, y, 0.0).astype(jnp.bfloat16)

    # ---- conv2 + BN2: output rows o = 0..TH-1 ------------------------------------------
    acc2_ref[...] = jnp.broadcast_to(b2_ref[...], acc2_ref.shape)
    for dh in range(3):                                # 3 MXU matmuls, K = W*Cout
        acc2_ref[...] += jnp.dot(mid[dh:dh + TH, :], wb2_ref[dh],
                                 preferred_element_type=jnp.float32)
    o_ref[0] = jnp.maximum(acc2_ref[...], 0.0).astype(o_ref.dtype)


def _make_band(w_hwio, W):
    """Banded weight matrix per kernel row: (3, W*Cin, W*Cout).

    band[dh][(w+dw-1)*Cin + ci, w*Cout + co] = w_hwio[dh, dw, ci, co]; taps with
    w+dw-1 outside [0, W) are simply absent -> W zero-padding is baked in.
    """
    kh, kw, _, _ = w_hwio.shape
    bands = []
    for dh in range(kh):
        acc = None
        for dw in range(kw):
            # S[wi, w] = 1 iff wi == w + dw - 1  -> shifted identity with k = 1 - dw.
            S = jnp.eye(W, k=1 - dw, dtype=w_hwio.dtype)
            term = jnp.kron(S, w_hwio[dh, dw])
            acc = term if acc is None else acc + term
        bands.append(acc)
    return jnp.stack(bands)                            # (3, W*Cin, W*Cout)


def double_conv_pallas(x_nchw, w1, g1, be1, m1, v1, w2, g2, be2, m2, v2,
                       eps=1e-5, tile_h=None):
    """x_nchw: (N, Cin, H, W); w1: (Cout, Cin, 3, 3); w2: (Cout, Cout, 3, 3).
    BN params gamma/beta/running_mean/running_var each (Cout,).  Returns (N, Cout, H, W) f32.
    """
    N, Cin, H, W = x_nchw.shape
    Cout = w1.shape[0]
    assert H % 8 == 0, "H must be a multiple of 8 (8-row aligned halo blocks)"

    # ---- pad Cin so conv1's contraction/lane dim W*Cin is a multiple of 128 (when cheap)
    Cin_p = Cin
    if (W * Cin) % 128 != 0:
        c_align = 128 // math.gcd(128, W)
        cand = -(-Cin // c_align) * c_align
        if cand <= max(8, 2 * Cin):
            Cin_p = cand
    lanes_in = W * Cin_p
    lanes_out = W * Cout

    # ---- fold inference-mode BN into the conv weights (scale) + a shift ----------------
    s1 = g1 / jnp.sqrt(v1 + eps)
    b1 = be1 - m1 * s1
    s2 = g2 / jnp.sqrt(v2 + eps)
    b2 = be2 - m2 * s2

    w1_p = jnp.pad(w1.astype(jnp.float32), ((0, 0), (0, Cin_p - Cin), (0, 0), (0, 0)))
    w1_hwio = jnp.transpose(w1_p, (2, 3, 1, 0)) * s1[None, None, None, :]
    w2_hwio = jnp.transpose(w2.astype(jnp.float32), (2, 3, 1, 0)) * s2[None, None, None, :]

    wb1 = _make_band(w1_hwio, W).astype(jnp.bfloat16)      # (3, W*Cin_p, W*Cout)
    wb2 = _make_band(w2_hwio, W).astype(jnp.bfloat16)      # (3, W*Cout,  W*Cout)
    b1_t = jnp.tile(b1.astype(jnp.float32), W).reshape(1, lanes_out)
    b2_t = jnp.tile(b2.astype(jnp.float32), W).reshape(1, lanes_out)

    # ---- choose the largest H tile that fits a (v7x-safe) VMEM budget ------------------
    const_bytes = (wb1.size + wb2.size) * 2 + (b1_t.size + b2_t.size) * 4

    def _step_bytes(th):
        x_db = 2 * (th + 8) * lanes_in * 2        # double-buffered body + halo input blocks
        o_db = 2 * th * lanes_out * 2             # double-buffered bf16 output block
        scr = (th + 8) * lanes_in * 2 + (2 * th + 2) * lanes_out * 4   # window + accumulators
        tmp = 2 * (th + 2) * lanes_out * 4        # y / mid temporaries headroom
        return x_db + o_db + scr + tmp

    if tile_h is None:
        budget = 24 * 2 ** 20                     # headroom inside v7x's 64 MiB/TC
        cands = [d for d in range(8, H + 1, 8) if H % d == 0]
        fits = [d for d in cands if const_bytes + _step_bytes(d) <= budget]
        tile_h = max(fits) if fits else min(cands)
    assert H % tile_h == 0 and tile_h % 8 == 0
    num_t = H // tile_h

    vmem_limit = int(min(max(2 * (const_bytes + _step_bytes(tile_h)), 32 * 2 ** 20),
                         56 * 2 ** 20))

    # ---- planar layout: (N, H+8, W*Cin_p), 2 zero rows on top, 6 below (2 halo + 4 align)
    x_nhwc = jnp.transpose(x_nchw, (0, 2, 3, 1))
    if Cin_p != Cin:
        x_nhwc = jnp.pad(x_nhwc, ((0, 0), (0, 0), (0, 0), (0, Cin_p - Cin)))
    x_pad = jnp.pad(x_nhwc.reshape(N, H, lanes_in),
                    ((0, 0), (2, 6), (0, 0))).astype(jnp.bfloat16)

    def _call(single_buffer_consts):
        const_kw = dict(pipeline_mode=pl.Buffered(1)) if single_buffer_consts else {}
        grid_spec = pltpu.PrefetchScalarGridSpec(
            num_scalar_prefetch=0,
            grid=(N, num_t),
            in_specs=[
                # Non-overlapping body rows [t*TH, (t+1)*TH) of the padded input.
                pl.BlockSpec((1, tile_h, lanes_in), lambda n, t: (n, t, 0)),
                # 8-row aligned halo block [(t+1)*TH, (t+1)*TH+8).
                pl.BlockSpec((1, 8, lanes_in),
                             lambda n, t: (n, (t + 1) * (tile_h // 8), 0)),
                pl.BlockSpec((3, lanes_in, lanes_out), lambda n, t: (0, 0, 0), **const_kw),
                pl.BlockSpec((1, lanes_out), lambda n, t: (0, 0), **const_kw),
                pl.BlockSpec((3, lanes_out, lanes_out), lambda n, t: (0, 0, 0), **const_kw),
                pl.BlockSpec((1, lanes_out), lambda n, t: (0, 0), **const_kw),
            ],
            out_specs=pl.BlockSpec((1, tile_h, lanes_out), lambda n, t: (n, t, 0)),
            scratch_shapes=[
                pltpu.VMEM((tile_h + 8, lanes_in), jnp.bfloat16),
                pltpu.VMEM((tile_h + 2, lanes_out), jnp.float32),
                pltpu.VMEM((tile_h, lanes_out), jnp.float32),
            ],
        )
        return pl.pallas_call(
            _double_conv_kernel,
            out_shape=jax.ShapeDtypeStruct((N, H, lanes_out), jnp.bfloat16),
            grid_spec=grid_spec,
            compiler_params=pltpu.CompilerParams(
                dimension_semantics=("parallel", "parallel"),
                vmem_limit_bytes=vmem_limit),
        )(x_pad, x_pad, wb1, b1_t, wb2, b2_t)

    try:
        out_planar = _call(True)
    except Exception:
        # Fallback for JAX versions without BlockSpec pipeline_mode support: identical
        # kernel, the constant weight/bias blocks are just double-buffered.
        out_planar = _call(False)

    # (N, H, W*Cout) bf16 -> NCHW f32 for interface parity with the PyTorch module.
    # TODO(synk): downstream UNet ops could consume the planar bf16 output directly and
    #             skip this transpose pass entirely.
    return jnp.transpose(out_planar.reshape(N, H, W, Cout).astype(jnp.float32),
                         (0, 3, 1, 2))


def _reference(x_nchw, w1, g1, be1, m1, v1, w2, g2, be2, m2, v2, eps=1e-5):
    """Pure-JAX (XLA, f32) reference, NCHW, inference-mode BN."""
    dn = lax.conv_dimension_numbers(x_nchw.shape, w1.shape, ("NCHW", "OIHW", "NCHW"))

    def bn_relu(y, g, b, m, v):
        g = g.reshape(1, -1, 1, 1)
        b = b.reshape(1, -1, 1, 1)
        m = m.reshape(1, -1, 1, 1)
        v = v.reshape(1, -1, 1, 1)
        return jnp.maximum((y - m) / jnp.sqrt(v + eps) * g + b, 0.0)

    y = lax.conv_general_dilated(x_nchw, w1, (1, 1), ((1, 1), (1, 1)),
                                 dimension_numbers=dn)
    y = bn_relu(y, g1, be1, m1, v1)
    y = lax.conv_general_dilated(y, w2, (1, 1), ((1, 1), (1, 1)),
                                 dimension_numbers=dn)
    return bn_relu(y, g2, be2, m2, v2)


if __name__ == "__main__":
    N, Cin, Cout, H, W = 2, 4, 8, 16, 16

    key = jax.random.PRNGKey(0)
    kx, kw1, kw2, kg1, kb1, km1, kv1, kg2, kb2, km2, kv2 = jax.random.split(key, 11)

    x = jax.random.normal(kx, (N, Cin, H, W), dtype=jnp.float32)

    # Conv weights (PyTorch OIHW layout).
    w1 = jax.random.normal(kw1, (Cout, Cin, 3, 3), dtype=jnp.float32) * 0.1
    w2 = jax.random.normal(kw2, (Cout, Cout, 3, 3), dtype=jnp.float32) * 0.1

    # Non-trivial BatchNorm parameters / running stats (eval mode) to exercise the fold.
    g1 = 1.0 + 0.1 * jax.random.normal(kg1, (Cout,), jnp.float32)
    be1 = 0.1 * jax.random.normal(kb1, (Cout,), jnp.float32)
    m1 = 0.1 * jax.random.normal(km1, (Cout,), jnp.float32)
    v1 = jax.random.uniform(kv1, (Cout,), jnp.float32, 0.5, 1.5)
    g2 = 1.0 + 0.1 * jax.random.normal(kg2, (Cout,), jnp.float32)
    be2 = 0.1 * jax.random.normal(kb2, (Cout,), jnp.float32)
    m2 = 0.1 * jax.random.normal(km2, (Cout,), jnp.float32)
    v2 = jax.random.uniform(kv2, (Cout,), jnp.float32, 0.5, 1.5)

    out = double_conv_pallas(x, w1, g1, be1, m1, v1, w2, g2, be2, m2, v2)
    out = jax.block_until_ready(out)

    ref = _reference(x, w1, g1, be1, m1, v1, w2, g2, be2, m2, v2)
    ref = jax.block_until_ready(ref)

    assert out.shape == (N, Cout, H, W), out.shape
    # bf16 MXU inputs + bf16 output store with f32 accumulation -> relaxed tolerance
    # vs. the f32 reference (per the review's precision note).
    np.testing.assert_allclose(np.asarray(out), np.asarray(ref), rtol=3e-2, atol=3e-2)

    print("KERNEL_OK")
</pallas_src>

<mosaic_0001>
module attributes {stable_mosaic.version = 11 : i64} {
  func.func @_double_conv_kernel(%arg0: i32, %arg1: i32, %arg2: memref<1x16x128xbf16, #tpu.memory_space<vmem>>, %arg3: memref<1x8x128xbf16, #tpu.memory_space<vmem>>, %arg4: memref<3x128x128xbf16, #tpu.memory_space<vmem>>, %arg5: memref<1x128xf32, #tpu.memory_space<vmem>>, %arg6: memref<3x128x128xbf16, #tpu.memory_space<vmem>>, %arg7: memref<1x128xf32, #tpu.memory_space<vmem>>, %arg8: memref<1x16x128xbf16, #tpu.memory_space<vmem>>, %arg9: memref<24x128xbf16, #tpu.memory_space<vmem>>, %arg10: memref<18x128xf32, #tpu.memory_space<vmem>>, %arg11: memref<16x128xf32, #tpu.memory_space<vmem>>) attributes {dimension_semantics = [#tpu.dimension_semantics<parallel>, #tpu.dimension_semantics<parallel>], iteration_bounds = array<i64: 2, 1>, scalar_prefetch = 0 : i64, scratch_operands = 3 : i64, tpu.core_type = #tpu.core_type<tc>, window_params = [{transform_indices = @transform_0, window_bounds = array<i64: 1, 16, 128>}, {transform_indices = @transform_1, window_bounds = array<i64: 1, 8, 128>}, {pipeline_mode = #tpu.pipeline_mode<synchronous>, transform_indices = @transform_2, window_bounds = array<i64: 3, 128, 128>}, {pipeline_mode = #tpu.pipeline_mode<synchronous>, transform_indices = @transform_3, window_bounds = array<i64: 1, 128>}, {pipeline_mode = #tpu.pipeline_mode<synchronous>, transform_indices = @transform_4, window_bounds = array<i64: 3, 128, 128>}, {pipeline_mode = #tpu.pipeline_mode<synchronous>, transform_indices = @transform_5, window_bounds = array<i64: 1, 128>}, {transform_indices = @transform_6, window_bounds = array<i64: 1, 16, 128>}]} {
    %c0 = arith.constant 0 : index
    %c0_0 = arith.constant 0 : index
    %c0_1 = arith.constant 0 : index
    %0 = vector.load %arg2[%c0, %c0_0, %c0_1] : memref<1x16x128xbf16, #tpu.memory_space<vmem>>, vector<1x16x128xbf16>
    %1 = vector.shape_cast %0 : vector<1x16x128xbf16> to vector<16x128xbf16>
    %c0_2 = arith.constant 0 : index
    %c0_3 = arith.constant 0 : index
    %2 = vector.load %arg9[%c0_2, %c0_3] : memref<24x128xbf16, #tpu.memory_space<vmem>>, vector<16x128xbf16>
    tpu.vector_store %arg9[%c0_2, %c0_3], %1 {strides = array<i32>} : memref<24x128xbf16, #tpu.memory_space<vmem>>, vector<16x128xbf16>,
    %c0_4 = arith.constant 0 : index
    %c0_5 = arith.constant 0 : index
    %c0_6 = arith.constant 0 : index
    %3 = vector.load %arg3[%c0_4, %c0_5, %c0_6] : memref<1x8x128xbf16, #tpu.memory_space<vmem>>, vector<1x8x128xbf16>
    %4 = vector.shape_cast %3 : vector<1x8x128xbf16> to vector<8x128xbf16>
    %c16 = arith.constant 16 : index
    %c0_7 = arith.constant 0 : index
    %5 = vector.load %arg9[%c16, %c0_7] : memref<24x128xbf16, #tpu.memory_space<vmem>>, vector<8x128xbf16>
    tpu.vector_store %arg9[%c16, %c0_7], %4 {strides = array<i32>} : memref<24x128xbf16, #tpu.memory_space<vmem>>, vector<8x128xbf16>,
    %c0_8 = arith.constant 0 : index
    %c0_9 = arith.constant 0 : index
    %6 = vector.load %arg9[%c0_8, %c0_9] : memref<24x128xbf16, #tpu.memory_space<vmem>>, vector<24x128xbf16>
    %c0_10 = arith.constant 0 : index
    %c0_11 = arith.constant 0 : index
    %7 = vector.load %arg5[%c0_10, %c0_11] : memref<1x128xf32, #tpu.memory_space<vmem>>, vector<1x128xf32>
    %8 = vector.shape_cast %7 : vector<1x128xf32> to vector<1x128xf32>
    %9 = vector.broadcast %8 : vector<1x128xf32> to vector<18x128xf32>
    %c0_12 = arith.constant 0 : index
    %c0_13 = arith.constant 0 : index
    %10 = vector.load %arg10[%c0_12, %c0_13] : memref<18x128xf32, #tpu.memory_space<vmem>>, vector<18x128xf32>
    tpu.vector_store %arg10[%c0_12, %c0_13], %9 {strides = array<i32>} : memref<18x128xf32, #tpu.memory_space<vmem>>, vector<18x128xf32>,
    %c0_14 = arith.constant 0 : index
    %c0_15 = arith.constant 0 : index
    %11 = vector.load %arg10[%c0_14, %c0_15] : memref<18x128xf32, #tpu.memory_space<vmem>>, vector<18x128xf32>
    %12 = vector.extract_strided_slice %6 {offsets = [0, 0], sizes = [18, 128], strides = [1, 1]} : vector<24x128xbf16> to vector<18x128xbf16>
    %c0_16 = arith.constant 0 : index
    %c0_17 = arith.constant 0 : index
    %c0_18 = arith.constant 0 : index
    %13 = vector.load %arg4[%c0_16, %c0_17, %c0_18] : memref<3x128x128xbf16, #tpu.memory_space<vmem>>, vector<1x128x128xbf16>
    %14 = vector.shape_cast %13 : vector<1x128x128xbf16> to vector<128x128xbf16>
    %cst = arith.constant dense<0.000000e+00> : vector<18x128xf32>
    %15 = tpu.matmul %12, %14, %cst {dimension_numbers = #tpu.dot_dimension_numbers<[1], [0], [0], [1], [0, 0, 1, 1], [], []>} : vector<18x128xbf16>, vector<128x128xbf16>, vector<18x128xf32> -> vector<18x128xf32>
    %16 = arith.addf %11, %15 : vector<18x128xf32>
    %c0_19 = arith.constant 0 : index
    %c0_20 = arith.constant 0 : index
    %17 = vector.load %arg10[%c0_19, %c0_20] : memref<18x128xf32, #tpu.memory_space<vmem>>, vector<18x128xf32>
    tpu.vector_store %arg10[%c0_19, %c0_20], %16 {strides = array<i32>} : memref<18x128xf32, #tpu.memory_space<vmem>>, vector<18x128xf32>,
    %c0_21 = arith.constant 0 : index
    %c0_22 = arith.constant 0 : index
    %18 = vector.load %arg10[%c0_21, %c0_22] : memref<18x128xf32, #tpu.memory_space<vmem>>, vector<18x128xf32>
    %19 = vector.extract_strided_slice %6 {offsets = [1, 0], sizes = [18, 128], strides = [1, 1]} : vector<24x128xbf16> to vector<18x128xbf16>
    %c1 = arith.constant 1 : index
    %c0_23 = arith.constant 0 : index
    %c0_24 = arith.constant 0 : index
    %20 = vector.load %arg4[%c1, %c0_23, %c0_24] : memref<3x128x128xbf16, #tpu.memory_space<vmem>>, vector<1x128x128xbf16>
    %21 = vector.shape_cast %20 : vector<1x128x128xbf16> to vector<128x128xbf16>
    %cst_25 = arith.constant dense<0.000000e+00> : vector<18x128xf32>
    %22 = tpu.matmul %19, %21, %cst_25 {dimension_numbers = #tpu.dot_dimension_numbers<[1], [0], [0], [1], [0, 0, 1, 1], [], []>} : vector<18x128xbf16>, vector<128x128xbf16>, vector<18x128xf32> -> vector<18x128xf32>
    %23 = arith.addf %18, %22 : vector<18x128xf32>
    %c0_26 = arith.constant 0 : index
    %c0_27 = arith.constant 0 : index
    %24 = vector.load %arg10[%c0_26, %c0_27] : memref<18x128xf32, #tpu.memory_space<vmem>>, vector<18x128xf32>
    tpu.vector_store %arg10[%c0_26, %c0_27], %23 {strides = array<i32>} : memref<18x128xf32, #tpu.memory_space<vmem>>, vector<18x128xf32>,
    %c0_28 = arith.constant 0 : index
    %c0_29 = arith.constant 0 : index
    %25 = vector.load %arg10[%c0_28, %c0_29] : memref<18x128xf32, #tpu.memory_space<vmem>>, vector<18x128xf32>
    %26 = vector.extract_strided_slice %6 {offsets = [2, 0], sizes = [18, 128], strides = [1, 1]} : vector<24x128xbf16> to vector<18x128xbf16>
    %c2 = arith.constant 2 : index
    %c0_30 = arith.constant 0 : index
    %c0_31 = arith.constant 0 : index
    %27 = vector.load %arg4[%c2, %c0_30, %c0_31] : memref<3x128x128xbf16, #tpu.memory_space<vmem>>, vector<1x128x128xbf16>
    %28 = vector.shape_cast %27 : vector<1x128x128xbf16> to vector<128x128xbf16>
    %cst_32 = arith.constant dense<0.000000e+00> : vector<18x128xf32>
    %29 = tpu.matmul %26, %28, %cst_32 {dimension_numbers = #tpu.dot_dimension_numbers<[1], [0], [0], [1], [0, 0, 1, 1], [], []>} : vector<18x128xbf16>, vector<128x128xbf16>, vector<18x128xf32> -> vector<18x128xf32>
    %30 = arith.addf %25, %29 : vector<18x128xf32>
    %c0_33 = arith.constant 0 : index
    %c0_34 = arith.constant 0 : index
    %31 = vector.load %arg10[%c0_33, %c0_34] : memref<18x128xf32, #tpu.memory_space<vmem>>, vector<18x128xf32>
    tpu.vector_store %arg10[%c0_33, %c0_34], %30 {strides = array<i32>} : memref<18x128xf32, #tpu.memory_space<vmem>>, vector<18x128xf32>,
    %c0_35 = arith.constant 0 : index
    %c0_36 = arith.constant 0 : index
    %32 = vector.load %arg10[%c0_35, %c0_36] : memref<18x128xf32, #tpu.memory_space<vmem>>, vector<18x128xf32>
    %cst_37 = arith.constant 0.000000e+00 : f32
    %33 = vector.broadcast %cst_37 : f32 to vector<18x128xf32>
    %34 = arith.maximumf %32, %33 : vector<18x128xf32>
    %35 = tpu.iota {dimensions = array<i32: 0>} : vector<18x1xi32>
    %c16_i32 = arith.constant 16 : i32
    %36 = arith.muli %arg1, %c16_i32 : i32
    %c1_i32 = arith.constant 1 : i32
    %37 = arith.subi %36, %c1_i32 : i32
    %38 = vector.broadcast %37 : i32 to vector<18x1xi32>
    %39 = arith.addi %38, %35 : vector<18x1xi32>
    %c0_i32 = arith.constant 0 : i32
    %40 = vector.broadcast %c0_i32 : i32 to vector<18x1xi32>
    %41 = arith.cmpi sge, %39, %40 : vector<18x1xi32>
    %c16_i32_38 = arith.constant 16 : i32
    %42 = vector.broadcast %c16_i32_38 : i32 to vector<18x1xi32>
    %43 = arith.cmpi slt, %39, %42 : vector<18x1xi32>
    %44 = arith.andi %41, %43 : vector<18x1xi1>
    %cst_39 = arith.constant 0.000000e+00 : f32
    %45 = vector.shape_cast %44 : vector<18x1xi1> to vector<18x1xi1>
    %46 = vector.broadcast %45 : vector<18x1xi1> to vector<18x128xi1>
    %47 = vector.broadcast %cst_39 : f32 to vector<18x128xf32>
    %48 = arith.select %46, %34, %47 : vector<18x128xi1>, vector<18x128xf32>
    %49 = arith.truncf %48 : vector<18x128xf32> to vector<18x128xbf16>
    %c0_40 = arith.constant 0 : index
    %c0_41 = arith.constant 0 : index
    %50 = vector.load %arg7[%c0_40, %c0_41] : memref<1x128xf32, #tpu.memory_space<vmem>>, vector<1x128xf32>
    %51 = vector.shape_cast %50 : vector<1x128xf32> to vector<1x128xf32>
    %52 = vector.broadcast %51 : vector<1x128xf32> to vector<16x128xf32>
    %c0_42 = arith.constant 0 : index
    %c0_43 = arith.constant 0 : index
    %53 = vector.load %arg11[%c0_42, %c0_43] : memref<16x128xf32, #tpu.memory_space<vmem>>, vector<16x128xf32>
    tpu.vector_store %arg11[%c0_42, %c0_43], %52 {strides = array<i32>} : memref<16x128xf32, #tpu.memory_space<vmem>>, vector<16x128xf32>,
    %c0_44 = arith.constant 0 : index
    %c0_45 = arith.constant 0 : index
    %54 = vector.load %arg11[%c0_44, %c0_45] : memref<16x128xf32, #tpu.memory_space<vmem>>, vector<16x128xf32>
    %55 = vector.extract_strided_slice %49 {offsets = [0, 0], sizes = [16, 128], strides = [1, 1]} : vector<18x128xbf16> to vector<16x128xbf16>
    %c0_46 = arith.constant 0 : index
    %c0_47 = arith.constant 0 : index
    %c0_48 = arith.constant 0 : index
    %56 = vector.load %arg6[%c0_46, %c0_47, %c0_48] : memref<3x128x128xbf16, #tpu.memory_space<vmem>>, vector<1x128x128xbf16>
    %57 = vector.shape_cast %56 : vector<1x128x128xbf16> to vector<128x128xbf16>
    %cst_49 = arith.constant dense<0.000000e+00> : vector<16x128xf32>
    %58 = tpu.matmul %55, %57, %cst_49 {dimension_numbers = #tpu.dot_dimension_numbers<[1], [0], [0], [1], [0, 0, 1, 1], [], []>} : vector<16x128xbf16>, vector<128x128xbf16>, vector<16x128xf32> -> vector<16x128xf32>
    %59 = arith.addf %54, %58 : vector<16x128xf32>
    %c0_50 = arith.constant 0 : index
    %c0_51 = arith.constant 0 : index
    %60 = vector.load %arg11[%c0_50, %c0_51] : memref<16x128xf32, #tpu.memory_space<vmem>>, vector<16x128xf32>
    tpu.vector_store %arg11[%c0_50, %c0_51], %59 {strides = array<i32>} : memref<16x128xf32, #tpu.memory_space<vmem>>, vector<16x128xf32>,
    %c0_52 = arith.constant 0 : index
    %c0_53 = arith.constant 0 : index
    %61 = vector.load %arg11[%c0_52, %c0_53] : memref<16x128xf32, #tpu.memory_space<vmem>>, vector<16x128xf32>
    %62 = vector.extract_strided_slice %49 {offsets = [1, 0], sizes = [16, 128], strides = [1, 1]} : vector<18x128xbf16> to vector<16x128xbf16>
    %c1_54 = arith.constant 1 : index
    %c0_55 = arith.constant 0 : index
    %c0_56 = arith.constant 0 : index
    %63 = vector.load %arg6[%c1_54, %c0_55, %c0_56] : memref<3x128x128xbf16, #tpu.memory_space<vmem>>, vector<1x128x128xbf16>
    %64 = vector.shape_cast %63 : vector<1x128x128xbf16> to vector<128x128xbf16>
    %cst_57 = arith.constant dense<0.000000e+00> : vector<16x128xf32>
    %65 = tpu.matmul %62, %64, %cst_57 {dimension_numbers = #tpu.dot_dimension_numbers<[1], [0], [0], [1], [0, 0, 1, 1], [], []>} : vector<16x128xbf16>, vector<128x128xbf16>, vector<16x128xf32> -> vector<16x128xf32>
    %66 = arith.addf %61, %65 : vector<16x128xf32>
    %c0_58 = arith.constant 0 : index
    %c0_59 = arith.constant 0 : index
    %67 = vector.load %arg11[%c0_58, %c0_59] : memref<16x128xf32, #tpu.memory_space<vmem>>, vector<16x128xf32>
    tpu.vector_store %arg11[%c0_58, %c0_59], %66 {strides = array<i32>} : memref<16x128xf32, #tpu.memory_space<vmem>>, vector<16x128xf32>,
    %c0_60 = arith.constant 0 : index
    %c0_61 = arith.constant 0 : index
    %68 = vector.load %arg11[%c0_60, %c0_61] : memref<16x128xf32, #tpu.memory_space<vmem>>, vector<16x128xf32>
    %69 = vector.extract_strided_slice %49 {offsets = [2, 0], sizes = [16, 128], strides = [1, 1]} : vector<18x128xbf16> to vector<16x128xbf16>
    %c2_62 = arith.constant 2 : index
    %c0_63 = arith.constant 0 : index
    %c0_64 = arith.constant 0 : index
    %70 = vector.load %arg6[%c2_62, %c0_63, %c0_64] : memref<3x128x128xbf16, #tpu.memory_space<vmem>>, vector<1x128x128xbf16>
    %71 = vector.shape_cast %70 : vector<1x128x128xbf16> to vector<128x128xbf16>
    %cst_65 = arith.constant dense<0.000000e+00> : vector<16x128xf32>
    %72 = tpu.matmul %69, %71, %cst_65 {dimension_numbers = #tpu.dot_dimension_numbers<[1], [0], [0], [1], [0, 0, 1, 1], [], []>} : vector<16x128xbf16>, vector<128x128xbf16>, vector<16x128xf32> -> vector<16x128xf32>
    %73 = arith.addf %68, %72 : vector<16x128xf32>
    %c0_66 = arith.constant 0 : index
    %c0_67 = arith.constant 0 : index
    %74 = vector.load %arg11[%c0_66, %c0_67] : memref<16x128xf32, #tpu.memory_space<vmem>>, vector<16x128xf32>
    tpu.vector_store %arg11[%c0_66, %c0_67], %73 {strides = array<i32>} : memref<16x128xf32, #tpu.memory_space<vmem>>, vector<16x128xf32>,
    %c0_68 = arith.constant 0 : index
    %c0_69 = arith.constant 0 : index
    %75 = vector.load %arg11[%c0_68, %c0_69] : memref<16x128xf32, #tpu.memory_space<vmem>>, vector<16x128xf32>
    %cst_70 = arith.constant 0.000000e+00 : f32
    %76 = vector.broadcast %cst_70 : f32 to vector<16x128xf32>
    %77 = arith.maximumf %75, %76 : vector<16x128xf32>
    %78 = arith.truncf %77 : vector<16x128xf32> to vector<16x128xbf16>
    %c0_71 = arith.constant 0 : index
    %c0_72 = arith.constant 0 : index
    %c0_73 = arith.constant 0 : index
    %79 = vector.load %arg8[%c0_71, %c0_72, %c0_73] : memref<1x16x128xbf16, #tpu.memory_space<vmem>>, vector<1x16x128xbf16>
    %80 = vector.shape_cast %79 : vector<1x16x128xbf16> to vector<16x128xbf16>
    %81 = vector.shape_cast %78 : vector<16x128xbf16> to vector<1x16x128xbf16>
    tpu.vector_store %arg8[%c0_71, %c0_72, %c0_73], %81 {strides = array<i32>} : memref<1x16x128xbf16, #tpu.memory_space<vmem>>, vector<1x16x128xbf16>,
    return
  }
  func.func @transform_0(%arg0: i32, %arg1: i32) -> (i32, i32, i32) {
    %c0_i32 = arith.constant 0 : i32
    %c0_i32_0 = arith.constant 0 : i32
    return %arg0, %arg1, %c0_i32 : i32, i32, i32
  }
  func.func @transform_1(%arg0: i32, %arg1: i32) -> (i32, i32, i32) {
    %c1_i32 = arith.constant 1 : i32
    %0 = arith.addi %arg1, %c1_i32 : i32
    %c2_i32 = arith.constant 2 : i32
    %1 = arith.muli %0, %c2_i32 : i32
    %c0_i32 = arith.constant 0 : i32
    %c0_i32_0 = arith.constant 0 : i32
    return %arg0, %1, %c0_i32 : i32, i32, i32
  }
  func.func @transform_2(%arg0: i32, %arg1: i32) -> (i32, i32, i32) {
    %c0_i32 = arith.constant 0 : i32
    %c0_i32_0 = arith.constant 0 : i32
    %c0_i32_1 = arith.constant 0 : i32
    %c0_i32_2 = arith.constant 0 : i32
    return %c0_i32, %c0_i32_0, %c0_i32_1 : i32, i32, i32
  }
  func.func @transform_3(%arg0: i32, %arg1: i32) -> (i32, i32) {
    %c0_i32 = arith.constant 0 : i32
    %c0_i32_0 = arith.constant 0 : i32
    %c0_i32_1 = arith.constant 0 : i32
    return %c0_i32, %c0_i32_0 : i32, i32
  }
  func.func @transform_4(%arg0: i32, %arg1: i32) -> (i32, i32, i32) {
    %c0_i32 = arith.constant 0 : i32
    %c0_i32_0 = arith.constant 0 : i32
    %c0_i32_1 = arith.constant 0 : i32
    %c0_i32_2 = arith.constant 0 : i32
    return %c0_i32, %c0_i32_0, %c0_i32_1 : i32, i32, i32
  }
  func.func @transform_5(%arg0: i32, %arg1: i32) -> (i32, i32) {
    %c0_i32 = arith.constant 0 : i32
    %c0_i32_0 = arith.constant 0 : i32
    %c0_i32_1 = arith.constant 0 : i32
    return %c0_i32, %c0_i32_0 : i32, i32
  }
  func.func @transform_6(%arg0: i32, %arg1: i32) -> (i32, i32, i32) {
    %c0_i32 = arith.constant 0 : i32
    %c0_i32_0 = arith.constant 0 : i32
    return %arg0, %arg1, %c0_i32 : i32, i32, i32
  }
}

module attributes {stable_mosaic.version = 11 : i64} {
  func.func @_double_conv_kernel(%arg0: i32, %arg1: i32, %arg2: memref<1x16x128xbf16, #tpu.memory_space<vmem>>, %arg3: memref<1x8x128xbf16, #tpu.memory_space<vmem>>, %arg4: memref<3x128x128xbf16, #tpu.memory_space<vmem>>, %arg5: memref<1x128xf32, #tpu.memory_space<vmem>>, %arg6: memref<3x128x128xbf16, #tpu.memory_space<vmem>>, %arg7: memref<1x128xf32, #tpu.memory_space<vmem>>, %arg8: memref<1x16x128xbf16, #tpu.memory_space<vmem>>, %arg9: memref<24x128xbf16, #tpu.memory_space<vmem>>, %arg10: memref<18x128xf32, #tpu.memory_space<vmem>>, %arg11: memref<16x128xf32, #tpu.memory_space<vmem>>) attributes {dimension_semantics = [#tpu.dimension_semantics<parallel>, #tpu.dimension_semantics<parallel>], iteration_bounds = array<i64: 2, 1>, scalar_prefetch = 0 : i64, scratch_operands = 3 : i64, tpu.core_type = #tpu.core_type<tc>, window_params = [{transform_indices = @transform_0, window_bounds = array<i64: 1, 16, 128>}, {transform_indices = @transform_1, window_bounds = array<i64: 1, 8, 128>}, {pipeline_mode = #tpu.pipeline_mode<synchronous>, transform_indices = @transform_2, window_bounds = array<i64: 3, 128, 128>}, {pipeline_mode = #tpu.pipeline_mode<synchronous>, transform_indices = @transform_3, window_bounds = array<i64: 1, 128>}, {pipeline_mode = #tpu.pipeline_mode<synchronous>, transform_indices = @transform_4, window_bounds = array<i64: 3, 128, 128>}, {pipeline_mode = #tpu.pipeline_mode<synchronous>, transform_indices = @transform_5, window_bounds = array<i64: 1, 128>}, {transform_indices = @transform_6, window_bounds = array<i64: 1, 16, 128>}]} {
    %c0 = arith.constant 0 : index
    %c0_0 = arith.constant 0 : index
    %c0_1 = arith.constant 0 : index
    %0 = vector.load %arg2[%c0, %c0_0, %c0_1] : memref<1x16x128xbf16, #tpu.memory_space<vmem>>, vector<1x16x128xbf16>
    %1 = vector.shape_cast %0 : vector<1x16x128xbf16> to vector<16x128xbf16>
    %c0_2 = arith.constant 0 : index
    %c0_3 = arith.constant 0 : index
    %2 = vector.load %arg9[%c0_2, %c0_3] : memref<24x128xbf16, #tpu.memory_space<vmem>>, vector<16x128xbf16>
    tpu.vector_store %arg9[%c0_2, %c0_3], %1 {strides = array<i32>} : memref<24x128xbf16, #tpu.memory_space<vmem>>, vector<16x128xbf16>,
    %c0_4 = arith.constant 0 : index
    %c0_5 = arith.constant 0 : index
    %c0_6 = arith.constant 0 : index
    %3 = vector.load %arg3[%c0_4, %c0_5, %c0_6] : memref<1x8x128xbf16, #tpu.memory_space<vmem>>, vector<1x8x128xbf16>
    %4 = vector.shape_cast %3 : vector<1x8x128xbf16> to vector<8x128xbf16>
    %c16 = arith.constant 16 : index
    %c0_7 = arith.constant 0 : index
    %5 = vector.load %arg9[%c16, %c0_7] : memref<24x128xbf16, #tpu.memory_space<vmem>>, vector<8x128xbf16>
    tpu.vector_store %arg9[%c16, %c0_7], %4 {strides = array<i32>} : memref<24x128xbf16, #tpu.memory_space<vmem>>, vector<8x128xbf16>,
    %c0_8 = arith.constant 0 : index
    %c0_9 = arith.constant 0 : index
    %6 = vector.load %arg9[%c0_8, %c0_9] : memref<24x128xbf16, #tpu.memory_space<vmem>>, vector<24x128xbf16>
    %c0_10 = arith.constant 0 : index
    %c0_11 = arith.constant 0 : index
    %7 = vector.load %arg5[%c0_10, %c0_11] : memref<1x128xf32, #tpu.memory_space<vmem>>, vector<1x128xf32>
    %8 = vector.shape_cast %7 : vector<1x128xf32> to vector<1x128xf32>
    %9 = vector.broadcast %8 : vector<1x128xf32> to vector<18x128xf32>
    %c0_12 = arith.constant 0 : index
    %c0_13 = arith.constant 0 : index
    %10 = vector.load %arg10[%c0_12, %c0_13] : memref<18x128xf32, #tpu.memory_space<vmem>>, vector<18x128xf32>
    tpu.vector_store %arg10[%c0_12, %c0_13], %9 {strides = array<i32>} : memref<18x128xf32, #tpu.memory_space<vmem>>, vector<18x128xf32>,
    %c0_14 = arith.constant 0 : index
    %c0_15 = arith.constant 0 : index
    %11 = vector.load %arg10[%c0_14, %c0_15] : memref<18x128xf32, #tpu.memory_space<vmem>>, vector<18x128xf32>
    %12 = vector.extract_strided_slice %6 {offsets = [0, 0], sizes = [18, 128], strides = [1, 1]} : vector<24x128xbf16> to vector<18x128xbf16>
    %c0_16 = arith.constant 0 : index
    %c0_17 = arith.constant 0 : index
    %c0_18 = arith.constant 0 : index
    %13 = vector.load %arg4[%c0_16, %c0_17, %c0_18] : memref<3x128x128xbf16, #tpu.memory_space<vmem>>, vector<1x128x128xbf16>
    %14 = vector.shape_cast %13 : vector<1x128x128xbf16> to vector<128x128xbf16>
    %cst = arith.constant dense<0.000000e+00> : vector<18x128xf32>
    %15 = tpu.matmul %12, %14, %cst {dimension_numbers = #tpu.dot_dimension_numbers<[1], [0], [0], [1], [0, 0, 1, 1], [], []>} : vector<18x128xbf16>, vector<128x128xbf16>, vector<18x128xf32> -> vector<18x128xf32>
    %16 = arith.addf %11, %15 : vector<18x128xf32>
    %c0_19 = arith.constant 0 : index
    %c0_20 = arith.constant 0 : index
    %17 = vector.load %arg10[%c0_19, %c0_20] : memref<18x128xf32, #tpu.memory_space<vmem>>, vector<18x128xf32>
    tpu.vector_store %arg10[%c0_19, %c0_20], %16 {strides = array<i32>} : memref<18x128xf32, #tpu.memory_space<vmem>>, vector<18x128xf32>,
    %c0_21 = arith.constant 0 : index
    %c0_22 = arith.constant 0 : index
    %18 = vector.load %arg10[%c0_21, %c0_22] : memref<18x128xf32, #tpu.memory_space<vmem>>, vector<18x128xf32>
    %19 = vector.extract_strided_slice %6 {offsets = [1, 0], sizes = [18, 128], strides = [1, 1]} : vector<24x128xbf16> to vector<18x128xbf16>
    %c1 = arith.constant 1 : index
    %c0_23 = arith.constant 0 : index
    %c0_24 = arith.constant 0 : index
    %20 = vector.load %arg4[%c1, %c0_23, %c0_24] : memref<3x128x128xbf16, #tpu.memory_space<vmem>>, vector<1x128x128xbf16>
    %21 = vector.shape_cast %20 : vector<1x128x128xbf16> to vector<128x128xbf16>
    %cst_25 = arith.constant dense<0.000000e+00> : vector<18x128xf32>
    %22 = tpu.matmul %19, %21, %cst_25 {dimension_numbers = #tpu.dot_dimension_numbers<[1], [0], [0], [1], [0, 0, 1, 1], [], []>} : vector<18x128xbf16>, vector<128x128xbf16>, vector<18x128xf32> -> vector<18x128xf32>
    %23 = arith.addf %18, %22 : vector<18x128xf32>
    %c0_26 = arith.constant 0 : index
    %c0_27 = arith.constant 0 : index
    %24 = vector.load %arg10[%c0_26, %c0_27] : memref<18x128xf32, #tpu.memory_space<vmem>>, vector<18x128xf32>
    tpu.vector_store %arg10[%c0_26, %c0_27], %23 {strides = array<i32>} : memref<18x128xf32, #tpu.memory_space<vmem>>, vector<18x128xf32>,
    %c0_28 = arith.constant 0 : index
    %c0_29 = arith.constant 0 : index
    %25 = vector.load %arg10[%c0_28, %c0_29] : memref<18x128xf32, #tpu.memory_space<vmem>>, vector<18x128xf32>
    %26 = vector.extract_strided_slice %6 {offsets = [2, 0], sizes = [18, 128], strides = [1, 1]} : vector<24x128xbf16> to vector<18x128xbf16>
    %c2 = arith.constant 2 : index
    %c0_30 = arith.constant 0 : index
    %c0_31 = arith.constant 0 : index
    %27 = vector.load %arg4[%c2, %c0_30, %c0_31] : memref<3x128x128xbf16, #tpu.memory_space<vmem>>, vector<1x128x128xbf16>
    %28 = vector.shape_cast %27 : vector<1x128x128xbf16> to vector<128x128xbf16>
    %cst_32 = arith.constant dense<0.000000e+00> : vector<18x128xf32>
    %29 = tpu.matmul %26, %28, %cst_32 {dimension_numbers = #tpu.dot_dimension_numbers<[1], [0], [0], [1], [0, 0, 1, 1], [], []>} : vector<18x128xbf16>, vector<128x128xbf16>, vector<18x128xf32> -> vector<18x128xf32>
    %30 = arith.addf %25, %29 : vector<18x128xf32>
    %c0_33 = arith.constant 0 : index
    %c0_34 = arith.constant 0 : index
    %31 = vector.load %arg10[%c0_33, %c0_34] : memref<18x128xf32, #tpu.memory_space<vmem>>, vector<18x128xf32>
    tpu.vector_store %arg10[%c0_33, %c0_34], %30 {strides = array<i32>} : memref<18x128xf32, #tpu.memory_space<vmem>>, vector<18x128xf32>,
    %c0_35 = arith.constant 0 : index
    %c0_36 = arith.constant 0 : index
    %32 = vector.load %arg10[%c0_35, %c0_36] : memref<18x128xf32, #tpu.memory_space<vmem>>, vector<18x128xf32>
    %cst_37 = arith.constant 0.000000e+00 : f32
    %33 = vector.broadcast %cst_37 : f32 to vector<18x128xf32>
    %34 = arith.maximumf %32, %33 : vector<18x128xf32>
    %35 = tpu.iota {dimensions = array<i32: 0>} : vector<18x1xi32>
    %c16_i32 = arith.constant 16 : i32
    %36 = arith.muli %arg1, %c16_i32 : i32
    %c1_i32 = arith.constant 1 : i32
    %37 = arith.subi %36, %c1_i32 : i32
    %38 = vector.broadcast %37 : i32 to vector<18x1xi32>
    %39 = arith.addi %38, %35 : vector<18x1xi32>
    %c0_i32 = arith.constant 0 : i32
    %40 = vector.broadcast %c0_i32 : i32 to vector<18x1xi32>
    %41 = arith.cmpi sge, %39, %40 : vector<18x1xi32>
    %c16_i32_38 = arith.constant 16 : i32
    %42 = vector.broadcast %c16_i32_38 : i32 to vector<18x1xi32>
    %43 = arith.cmpi slt, %39, %42 : vector<18x1xi32>
    %44 = arith.andi %41, %43 : vector<18x1xi1>
    %cst_39 = arith.constant 0.000000e+00 : f32
    %45 = vector.shape_cast %44 : vector<18x1xi1> to vector<18x1xi1>
    %46 = vector.broadcast %45 : vector<18x1xi1> to vector<18x128xi1>
    %47 = vector.broadcast %cst_39 : f32 to vector<18x128xf32>
    %48 = arith.select %46, %34, %47 : vector<18x128xi1>, vector<18x128xf32>
    %49 = arith.truncf %48 : vector<18x128xf32> to vector<18x128xbf16>
    %c0_40 = arith.constant 0 : index
    %c0_41 = arith.constant 0 : index
    %50 = vector.load %arg7[%c0_40, %c0_41] : memref<1x128xf32, #tpu.memory_space<vmem>>, vector<1x128xf32>
    %51 = vector.shape_cast %50 : vector<1x128xf32> to vector<1x128xf32>
    %52 = vector.broadcast %51 : vector<1x128xf32> to vector<16x128xf32>
    %c0_42 = arith.constant 0 : index
    %c0_43 = arith.constant 0 : index
    %53 = vector.load %arg11[%c0_42, %c0_43] : memref<16x128xf32, #tpu.memory_space<vmem>>, vector<16x128xf32>
    tpu.vector_store %arg11[%c0_42, %c0_43], %52 {strides = array<i32>} : memref<16x128xf32, #tpu.memory_space<vmem>>, vector<16x128xf32>,
    %c0_44 = arith.constant 0 : index
    %c0_45 = arith.constant 0 : index
    %54 = vector.load %arg11[%c0_44, %c0_45] : memref<16x128xf32, #tpu.memory_space<vmem>>, vector<16x128xf32>
    %55 = vector.extract_strided_slice %49 {offsets = [0, 0], sizes = [16, 128], strides = [1, 1]} : vector<18x128xbf16> to vector<16x128xbf16>
    %c0_46 = arith.constant 0 : index
    %c0_47 = arith.constant 0 : index
    %c0_48 = arith.constant 0 : index
    %56 = vector.load %arg6[%c0_46, %c0_47, %c0_48] : memref<3x128x128xbf16, #tpu.memory_space<vmem>>, vector<1x128x128xbf16>
    %57 = vector.shape_cast %56 : vector<1x128x128xbf16> to vector<128x128xbf16>
    %cst_49 = arith.constant dense<0.000000e+00> : vector<16x128xf32>
    %58 = tpu.matmul %55, %57, %cst_49 {dimension_numbers = #tpu.dot_dimension_numbers<[1], [0], [0], [1], [0, 0, 1, 1], [], []>} : vector<16x128xbf16>, vector<128x128xbf16>, vector<16x128xf32> -> vector<16x128xf32>
    %59 = arith.addf %54, %58 : vector<16x128xf32>
    %c0_50 = arith.constant 0 : index
    %c0_51 = arith.constant 0 : index
    %60 = vector.load %arg11[%c0_50, %c0_51] : memref<16x128xf32, #tpu.memory_space<vmem>>, vector<16x128xf32>
    tpu.vector_store %arg11[%c0_50, %c0_51], %59 {strides = array<i32>} : memref<16x128xf32, #tpu.memory_space<vmem>>, vector<16x128xf32>,
    %c0_52 = arith.constant 0 : index
    %c0_53 = arith.constant 0 : index
    %61 = vector.load %arg11[%c0_52, %c0_53] : memref<16x128xf32, #tpu.memory_space<vmem>>, vector<16x128xf32>
    %62 = vector.extract_strided_slice %49 {offsets = [1, 0], sizes = [16, 128], strides = [1, 1]} : vector<18x128xbf16> to vector<16x128xbf16>
    %c1_54 = arith.constant 1 : index
    %c0_55 = arith.constant 0 : index
    %c0_56 = arith.constant 0 : index
    %63 = vector.load %arg6[%c1_54, %c0_55, %c0_56] : memref<3x128x128xbf16, #tpu.memory_space<vmem>>, vector<1x128x128xbf16>
    %64 = vector.shape_cast %63 : vector<1x128x128xbf16> to vector<128x128xbf16>
    %cst_57 = arith.constant dense<0.000000e+00> : vector<16x128xf32>
    %65 = tpu.matmul %62, %64, %cst_57 {dimension_numbers = #tpu.dot_dimension_numbers<[1], [0], [0], [1], [0, 0, 1, 1], [], []>} : vector<16x128xbf16>, vector<128x128xbf16>, vector<16x128xf32> -> vector<16x128xf32>
    %66 = arith.addf %61, %65 : vector<16x128xf32>
    %c0_58 = arith.constant 0 : index
    %c0_59 = arith.constant 0 : index
    %67 = vector.load %arg11[%c0_58, %c0_59] : memref<16x128xf32, #tpu.memory_space<vmem>>, vector<16x128xf32>
    tpu.vector_store %arg11[%c0_58, %c0_59], %66 {strides = array<i32>} : memref<16x128xf32, #tpu.memory_space<vmem>>, vector<16x128xf32>,
    %c0_60 = arith.constant 0 : index
    %c0_61 = arith.constant 0 : index
    %68 = vector.load %arg11[%c0_60, %c0_61] : memref<16x128xf32, #tpu.memory_space<vmem>>, vector<16x128xf32>
    %69 = vector.extract_strided_slice %49 {offsets = [2, 0], sizes = [16, 128], strides = [1, 1]} : vector<18x128xbf16> to vector<16x128xbf16>
    %c2_62 = arith.constant 2 : index
    %c0_63 = arith.constant 0 : index
    %c0_64 = arith.constant 0 : index
    %70 = vector.load %arg6[%c2_62, %c0_63, %c0_64] : memref<3x128x128xbf16, #tpu.memory_space<vmem>>, vector<1x128x128xbf16>
    %71 = vector.shape_cast %70 : vector<1x128x128xbf16> to vector<128x128xbf16>
    %cst_65 = arith.constant dense<0.000000e+00> : vector<16x128xf32>
    %72 = tpu.matmul %69, %71, %cst_65 {dimension_numbers = #tpu.dot_dimension_numbers<[1], [0], [0], [1], [0, 0, 1, 1], [], []>} : vector<16x128xbf16>, vector<128x128xbf16>, vector<16x128xf32> -> vector<16x128xf32>
    %73 = arith.addf %68, %72 : vector<16x128xf32>
    %c0_66 = arith.constant 0 : index
    %c0_67 = arith.constant 0 : index
    %74 = vector.load %arg11[%c0_66, %c0_67] : memref<16x128xf32, #tpu.memory_space<vmem>>, vector<16x128xf32>
    tpu.vector_store %arg11[%c0_66, %c0_67], %73 {strides = array<i32>} : memref<16x128xf32, #tpu.memory_space<vmem>>, vector<16x128xf32>,
    %c0_68 = arith.constant 0 : index
    %c0_69 = arith.constant 0 : index
    %75 = vector.load %arg11[%c0_68, %c0_69] : memref<16x128xf32, #tpu.memory_space<vmem>>, vector<16x128xf32>
    %cst_70 = arith.constant 0.000000e+00 : f32
    %76 = vector.broadcast %cst_70 : f32 to vector<16x128xf32>
    %77 = arith.maximumf %75, %76 : vector<16x128xf32>
    %78 = arith.truncf %77 : vector<16x128xf32> to vector<16x128xbf16>
    %c0_71 = arith.constant 0 : index
    %c0_72 = arith.constant 0 : index
    %c0_73 = arith.constant 0 : index
    %79 = vector.load %arg8[%c0_71, %c0_72, %c0_73] : memref<1x16x128xbf16, #tpu.memory_space<vmem>>, vector<1x16x128xbf16>
    %80 = vector.shape_cast %79 : vector<1x16x128xbf16> to vector<16x128xbf16>
    %81 = vector.shape_cast %78 : vector<16x128xbf16> to vector<1x16x128xbf16>
    tpu.vector_store %arg8[%c0_71, %c0_72, %c0_73], %81 {strides = array<i32>} : memref<1x16x128xbf16, #tpu.memory_space<vmem>>, vector<1x16x128xbf16>,
    return
  }
  func.func @transform_0(%arg0: i32, %arg1: i32) -> (i32, i32, i32) {
    %c0_i32 = arith.constant 0 : i32
    %c0_i32_0 = arith.constant 0 : i32
    return %arg0, %arg1, %c0_i32 : i32, i32, i32
  }
  func.func @transform_1(%arg0: i32, %arg1: i32) -> (i32, i32, i32) {
    %c1_i32 = arith.constant 1 : i32
    %0 = arith.addi %arg1, %c1_i32 : i32
    %c2_i32 = arith.constant 2 : i32
    %1 = arith.muli %0, %c2_i32 : i32
    %c0_i32 = arith.constant 0 : i32
    %c0_i32_0 = arith.constant 0 : i32
    return %arg0, %1, %c0_i32 : i32, i32, i32
  }
  func.func @transform_2(%arg0: i32, %arg1: i32) -> (i32, i32, i32) {
    %c0_i32 = arith.constant 0 : i32
    %c0_i32_0 = arith.constant 0 : i32
    %c0_i32_1 = arith.constant 0 : i32
    %c0_i32_2 = arith.constant 0 : i32
    return %c0_i32, %c0_i32_0, %c0_i32_1 : i32, i32, i32
  }
  func.func @transform_3(%arg0: i32, %arg1: i32) -> (i32, i32) {
    %c0_i32 = arith.constant 0 : i32
    %c0_i32_0 = arith.constant 0 : i32
    %c0_i32_1 = arith.constant 0 : i32
    return %c0_i32, %c0_i32_0 : i32, i32
  }
  func.func @transform_4(%arg0: i32, %arg1: i32) -> (i32, i32, i32) {
    %c0_i32 = arith.constant 0 : i32
    %c0_i32_0 = arith.constant 0 : i32
    %c0_i32_1 = arith.constant 0 : i32
    %c0_i32_2 = arith.constant 0 : i32
    return %c0_i32, %c0_i32_0, %c0_i32_1 : i32, i32, i32
  }
  func.func @transform_5(%arg0: i32, %arg1: i32) -> (i32, i32) {
    %c0_i32 = arith.constant 0 : i32
    %c0_i32_0 = arith.constant 0 : i32
    %c0_i32_1 = arith.constant 0 : i32
    return %c0_i32, %c0_i32_0 : i32, i32
  }
  func.func @transform_6(%arg0: i32, %arg1: i32) -> (i32, i32, i32) {
    %c0_i32 = arith.constant 0 : i32
    %c0_i32_0 = arith.constant 0 : i32
    return %arg0, %arg1, %c0_i32 : i32, i32, i32
  }
}

</mosaic_0001>

<llo_original>
// kernel: tpu_custom_call.1
$region0: #{tpu_custom_call.1}
  #allocation0 [shape = 'u32[]', space=smem, size = 0x4, offset = 0x4, fixed_abs, tag = 'smem constant byte address 0x4 - core index']
  #allocation1 [shape = 'u32[144,128]{1,0:T(1,128)}', space=vmem, size = 0x12000, scoped, tag = 'internal scratch']
  #allocation2 [shape = 'bf16[24,128]{1,0:T(8,128)(2,1)}', space=vmem, size = 0x1800, scoped, tag = 'scratch operand']
  #allocation3 [shape = 'f32[18,128]{1,0:T(8,128)}', space=vmem, size = 0x3000, scoped, tag = 'scratch operand']
  #allocation4 [shape = 'f32[16,128]{1,0:T(8,128)}', space=vmem, size = 0x2000, scoped, tag = 'scratch operand']
  %s0 = inlined_call_operand.hbm [shape: bf16[2,24,128], index: 0, kind: input, shape index: {}]
  %s1 = inlined_call_operand.hbm [shape: bf16[2,24,128], index: 1, kind: input, shape index: {}]
  %s2 = inlined_call_operand.hbm [shape: bf16[3,128,128], index: 2, kind: input, shape index: {}]
  %s3 = inlined_call_operand.vmem [shape: f32[1,128], index: 3, kind: input, shape index: {}]
  %s4 = inlined_call_operand.hbm [shape: bf16[3,128,128], index: 4, kind: input, shape index: {}]
  %s5 = inlined_call_operand.vmem [shape: f32[1,128], index: 5, kind: input, shape index: {}]
  %s6 = inlined_call_operand.hbm [shape: bf16[2,16,128], index: 6, kind: output, shape index: {}]
  %s7 = sld [smem:[#allocation0]]
  $region73: #{tpu_custom_call.1} parent=0
    _
  %s9 = ssub.s32 1, %s7
  %s10 = scalar_select 0, %s9, %s7
  $region1: #{tpu_custom_call.1} parent=0
    #allocation5 [shape = 'u8[8192]{0}', space=vmem, size = 0x2000, scoped, tag = 'input window, operand 0']
    #allocation6 [shape = 's32[2]{0}', space=sflag, size = 0x8, scoped, tag = 'scoped memory for tpu_custom_call.1']
    #allocation7 [shape = 's32[2]{0}', space=sflag, size = 0x8, scoped, tag = 'scoped memory for tpu_custom_call.1']
    #allocation8 [shape = 'u8[4096]{0}', space=vmem, size = 0x1000, scoped, tag = 'input window, operand 1']
    #allocation9 [shape = 's32[2]{0}', space=sflag, size = 0x8, scoped, tag = 'scoped memory for tpu_custom_call.1']
    #allocation10 [shape = 'u8[98304]{0}', space=vmem, size = 0x18000, scoped, tag = 'input window, operand 2, single buffered']
    #allocation11 [shape = 'u8[98304]{0}', space=vmem, size = 0x18000, scoped, tag = 'input window, operand 4, single buffered']
    #allocation12 [shape = 's32[1]{0}', space=sflag, size = 0x4, scoped, tag = 'scoped memory for tpu_custom_call.1']
    #allocation13 [shape = 'u8[8192]{0}', space=vmem, size = 0x2000, scoped, tag = 'output window, operand 0']
    %11 = vsyncpa [#allocation6], 0
    %s12 = scalar_lea.sflag [#allocation6], 1
    %13 = vsyncpa %s12, 0
    %14 = vsyncpa [#allocation9], 0
    %s15 = scalar_lea.sflag [#allocation9], 1
    %16 = vsyncpa %s15, 0
    %17 = vsyncpa [#allocation12], 0
    %18 = vsyncpa [#allocation7], 0
    %s19 = scalar_lea.sflag [#allocation7], 1
    %20 = vsyncpa %s19, 0
    loop: start=0, step=1, limit=4
    $region2: #{tpu_custom_call.1} parent=1 // loop_pre_header
      _
    $region3: #{tpu_custom_call.1} parent=1 // loop_header
      %s22 = sphi 0, %s26
      %p23 = scmp.ge.s32.totalorder %s22, 4
      %s29 = sphi 0, %s41
      %s30 = sphi 0, %s37
      %s31 = sphi 0, %s29
      %s32 = sphi 0, %s30
      %s33 = sphi 0, %s31
      %s34 = sphi 0, %s32
      %s46 = sphi 0, %s48
      %s49 = sphi 0, %s46
      %s50 = sphi 0, %s49
      %s66 = sphi 0, %s50
      %s78 = sphi 0, %s80
      %s81 = sphi 0, %s78
      %s82 = sphi 0, %s81
      %s98 = sphi 0, %s82
      %s102 = sphi 0, %s102
      %s104 = sphi 0, %s102
      %s105 = sphi 0, %s104
      %s119 = sphi 0, %s105
      %s123 = sphi 0, %s123
      %s125 = sphi 0, %s123
      %s126 = sphi 0, %s125
      %s140 = sphi 0, %s126
      %s144 = sphi 0, %s144
      %s146 = sphi 0, %s144
      %s147 = sphi 0, %s146
      %s161 = sphi 0, %s147
      %s165 = sphi 0, %s165
      %s167 = sphi 0, %s165
      %s168 = sphi 0, %s167
      %s182 = sphi 0, %s168
      %s190 = sphi 0, %s192
      %s193 = sphi 0, %s190
      %s194 = sphi 0, %s193
      %s210 = sphi 0, %s194
    $region4: #{tpu_custom_call.1} parent=1 // loop_header_branch
      %25 = sbr.rel (%p23) target = $region8
    $region5: #{tpu_custom_call.1} parent=1 // loop_body
      %s27 = ssub.s32 %s22, 1
      %s28 = ssub.s32 %s22, 2
      %s35 = sadd.s32 1, %s30
      %p36 = scmp.ge.s32.totalorder %s35, 1
      %s37 = scalar_select %p36, 0, %s35
      %s38 = sadd.s32 1, %s29
      %s39 = scalar_select %p36, %s38, %s29
      %p40 = scmp.ge.s32.totalorder %s39, 2
      %s41 = scalar_select %p40, 0, %s39
      %s42 = ssub.s32 %s29, %s41
      %s43 = ssub.s32 %s30, %s37
      %s44 = sor.u32 %s42, %s43
      %p45 = scmp.eq.s32.totalorder %s44, 0
      %s47 = sadd.s32 %s46, 1
      %s48 = scalar_select %p45, %s46, %s47
      %p51 = pneg %p45
      %p52 = scmp.eq.s32.totalorder %s22, 1
      %p53 = por %p51, %p52
      %p54 = scmp.ne.s32.totalorder %s46, %s49
      %p55 = scmp.eq.s32.totalorder %s22, 0
      %p56 = por %p54, %p55
      %p57 = scmp.ne.s32.totalorder %s46, %s49
      %p58 = scmp.eq.s32.totalorder %s27, 1
      %p59 = por %p57, %p58
      %p60 = scmp.ne.s32.totalorder %s49, %s50
      %p61 = scmp.eq.s32.totalorder %s27, 0
      %p62 = por %p60, %p61
      %p63 = scmp.ne.s32.totalorder %s49, %s50
      %p64 = scmp.eq.s32.totalorder %s28, 1
      %p65 = por %p63, %p64
      %p67 = scmp.ne.s32.totalorder %s50, %s66
      %p68 = scmp.eq.s32.totalorder %s28, 0
      %p69 = por %p67, %p68
      %s70 = sadd.s32 %s30, 1
      %s71 = smul.u32 %s70, 2
      %s72 = sadd.s32 %s37, 1
      %s73 = smul.u32 %s72, 2
      %s74 = ssub.s32 %s29, %s41
      %s75 = ssub.s32 %s71, %s73
      %s76 = sor.u32 %s74, %s75
      %p77 = scmp.eq.s32.totalorder %s76, 0
      %s79 = sadd.s32 %s78, 1
      %s80 = scalar_select %p77, %s78, %s79
      %p83 = pneg %p77
      %p84 = scmp.eq.s32.totalorder %s22, 1
      %p85 = por %p83, %p84
      %p86 = scmp.ne.s32.totalorder %s78, %s81
      %p87 = scmp.eq.s32.totalorder %s22, 0
      %p88 = por %p86, %p87
      %p89 = scmp.ne.s32.totalorder %s78, %s81
      %p90 = scmp.eq.s32.totalorder %s27, 1
      %p91 = por %p89, %p90
      %p92 = scmp.ne.s32.totalorder %s81, %s82
      %p93 = scmp.eq.s32.totalorder %s27, 0
      %p94 = por %p92, %p93
      %p95 = scmp.ne.s32.totalorder %s81, %s82
      %p96 = scmp.eq.s32.totalorder %s28, 1
      %p97 = por %p95, %p96
      %p99 = scmp.ne.s32.totalorder %s82, %s98
      %p100 = scmp.eq.s32.totalorder %s28, 0
      %p101 = por %p99, %p100
      %s103 = sadd.s32 %s102, 1
      %p106 = scmp.eq.s32.totalorder %s22, 1
      %p107 = scmp.ne.s32.totalorder %s102, %s104
      %p108 = scmp.eq.s32.totalorder %s22, 0
      %p109 = por %p107, %p108
      %p110 = scmp.ne.s32.totalorder %s102, %s104
      %p111 = scmp.eq.s32.totalorder %s27, 1
      %p112 = por %p110, %p111
      %p113 = scmp.ne.s32.totalorder %s104, %s105
      %p114 = scmp.eq.s32.totalorder %s27, 0
      %p115 = por %p113, %p114
      %p116 = scmp.ne.s32.totalorder %s104, %s105
      %p117 = scmp.eq.s32.totalorder %s28, 1
      %p118 = por %p116, %p117
      %p120 = scmp.ne.s32.totalorder %s105, %s119
      %p121 = scmp.eq.s32.totalorder %s28, 0
      %p122 = por %p120, %p121
      %s124 = sadd.s32 %s123, 1
      %p127 = scmp.eq.s32.totalorder %s22, 1
      %p128 = scmp.ne.s32.totalorder %s123, %s125
      %p129 = scmp.eq.s32.totalorder %s22, 0
      %p130 = por %p128, %p129
      %p131 = scmp.ne.s32.totalorder %s123, %s125
      %p132 = scmp.eq.s32.totalorder %s27, 1
      %p133 = por %p131, %p132
      %p134 = scmp.ne.s32.totalorder %s125, %s126
      %p135 = scmp.eq.s32.totalorder %s27, 0
      %p136 = por %p134, %p135
      %p137 = scmp.ne.s32.totalorder %s125, %s126
      %p138 = scmp.eq.s32.totalorder %s28, 1
      %p139 = por %p137, %p138
      %p141 = scmp.ne.s32.totalorder %s126, %s140
      %p142 = scmp.eq.s32.totalorder %s28, 0
      %p143 = por %p141, %p142
      %s145 = sadd.s32 %s144, 1
      %p148 = scmp.eq.s32.totalorder %s22, 1
      %p149 = scmp.ne.s32.totalorder %s144, %s146
      %p150 = scmp.eq.s32.totalorder %s22, 0
      %p151 = por %p149, %p150
      %p152 = scmp.ne.s32.totalorder %s144, %s146
      %p153 = scmp.eq.s32.totalorder %s27, 1
      %p154 = por %p152, %p153
      %p155 = scmp.ne.s32.totalorder %s146, %s147
      %p156 = scmp.eq.s32.totalorder %s27, 0
      %p157 = por %p155, %p156
      %p158 = scmp.ne.s32.totalorder %s146, %s147
      %p159 = scmp.eq.s32.totalorder %s28, 1
      %p160 = por %p158, %p159
      %p162 = scmp.ne.s32.totalorder %s147, %s161
      %p163 = scmp.eq.s32.totalorder %s28, 0
      %p164 = por %p162, %p163
      %s166 = sadd.s32 %s165, 1
      %p169 = scmp.eq.s32.totalorder %s22, 1
      %p170 = scmp.ne.s32.totalorder %s165, %s167
      %p171 = scmp.eq.s32.totalorder %s22, 0
      %p172 = por %p170, %p171
      %p173 = scmp.ne.s32.totalorder %s165, %s167
      %p174 = scmp.eq.s32.totalorder %s27, 1
      %p175 = por %p173, %p174
      %p176 = scmp.ne.s32.totalorder %s167, %s168
      %p177 = scmp.eq.s32.totalorder %s27, 0
      %p178 = por %p176, %p177
      %p179 = scmp.ne.s32.totalorder %s167, %s168
      %p180 = scmp.eq.s32.totalorder %s28, 1
      %p181 = por %p179, %p180
      %p183 = scmp.ne.s32.totalorder %s168, %s182
      %p184 = scmp.eq.s32.totalorder %s28, 0
      %p185 = por %p183, %p184
      %s186 = ssub.s32 %s29, %s41
      %s187 = ssub.s32 %s30, %s37
      %s188 = sor.u32 %s186, %s187
      %p189 = scmp.eq.s32.totalorder %s188, 0
      %s191 = sadd.s32 %s190, 1
      %s192 = scalar_select %p189, %s190, %s191
      %p195 = pneg %p189
      %p196 = scmp.eq.s32.totalorder %s22, 1
      %p197 = por %p195, %p196
      %p198 = scmp.ne.s32.totalorder %s190, %s193
      %p199 = scmp.eq.s32.totalorder %s22, 0
      %p200 = por %p198, %p199
      %p201 = scmp.ne.s32.totalorder %s190, %s193
      %p202 = scmp.eq.s32.totalorder %s27, 1
      %p203 = por %p201, %p202
      %p204 = scmp.ne.s32.totalorder %s193, %s194
      %p205 = scmp.eq.s32.totalorder %s27, 0
      %p206 = por %p204, %p205
      %p207 = scmp.ne.s32.totalorder %s193, %s194
      %p208 = scmp.eq.s32.totalorder %s28, 1
      %p209 = por %p207, %p208
      %p211 = scmp.ne.s32.totalorder %s194, %s210
      %p212 = scmp.eq.s32.totalorder %s28, 0
      %p213 = por %p211, %p212
      %p214 = scmp.le.s32.totalorder 1, %s22
      %p215 = scmp.lt.s32.totalorder %s22, 3
      %p216 = pnand %p214, %p215
      %p217 = pneg %p216
      // Predicated region
      $region9: #{tpu_custom_call.1} parent=5 // pred_check
        _
      $region10: #{tpu_custom_call.1} parent=5 // pred_check_branch
        %219 = sbr.rel (%p216) target = $region12
      $region11: #{tpu_custom_call.1} parent=5 // pred_region
        %s220 = ssub.s32 %s22, 1
        // Predicated region
        $region13: #{tpu_custom_call.1} parent=11 // pred_check
          %p221 = pneg %p115
        $region14: #{tpu_custom_call.1} parent=11 // pred_check_branch
          %223 = sbr.rel (%p221) target = $region16
        $region15: #{tpu_custom_call.1} parent=11 // pred_region
          %s225 = ssub.s32 3072, 3072
          %226 = vsyncadd [#allocation9], %s225
          %s227 = sshll.u32 [#allocation10], 4
          %s228 = int_to_ptr.vmem [resolvable:$true] %s227
          %233 = dma.hbm_to_vmem [thread:$0]  %s2, 3072, %s228, [#allocation9], 64, 64, 4
        $region16: #{tpu_custom_call.1} parent=11 // pred_fallthru
          _
        // Predicated region
        $region17: #{tpu_custom_call.1} parent=11 // pred_check
          %p234 = pneg %p136
        $region18: #{tpu_custom_call.1} parent=11 // pred_check_branch
          %236 = sbr.rel (%p234) target = $region20
        $region19: #{tpu_custom_call.1} parent=11 // pred_region
          _
        $region20: #{tpu_custom_call.1} parent=11 // pred_fallthru
          _
        // Predicated region
        $region21: #{tpu_custom_call.1} parent=11 // pred_check
          %p237 = pneg %p157
        $region22: #{tpu_custom_call.1} parent=11 // pred_check_branch
          %239 = sbr.rel (%p237) target = $region24
        $region23: #{tpu_custom_call.1} parent=11 // pred_region
          %s241 = ssub.s32 3072, 3072
          %242 = vsyncadd [#allocation12], %s241
          %s243 = sshll.u32 [#allocation11], 4
          %s244 = int_to_ptr.vmem [resolvable:$true] %s243
          %249 = dma.hbm_to_vmem [thread:$0]  %s4, 3072, %s244, [#allocation12], 64, 64, 4
        $region24: #{tpu_custom_call.1} parent=11 // pred_fallthru
          _
        // Predicated region
        $region25: #{tpu_custom_call.1} parent=11 // pred_check
          %p250 = pneg %p178
        $region26: #{tpu_custom_call.1} parent=11 // pred_check_branch
          %252 = sbr.rel (%p250) target = $region28
        $region27: #{tpu_custom_call.1} parent=11 // pred_region
          _
        $region28: #{tpu_custom_call.1} parent=11 // pred_fallthru
          _
      $region12: #{tpu_custom_call.1} parent=5 // pred_fallthru
        _
      %p253 = scmp.lt.s32.totalorder %s22, 2
      // Predicated region
      $region29: #{tpu_custom_call.1} parent=5 // pred_check
        %p254 = pneg %p253
      $region30: #{tpu_custom_call.1} parent=5 // pred_check_branch
        %256 = sbr.rel (%p254) target = $region32
      $region31: #{tpu_custom_call.1} parent=5 // pred_region
        // Predicated region
        $region33: #{tpu_custom_call.1} parent=31 // pred_check
          %p257 = pneg %p56
        $region34: #{tpu_custom_call.1} parent=31 // pred_check_branch
          %259 = sbr.rel (%p257) target = $region36
        $region35: #{tpu_custom_call.1} parent=31 // pred_region
          %s260 = sand.u32 %s46, 1
          %s261 = scalar_lea.sflag [#allocation6], %s260
          %s262 = sand.u32 %s46, 1
          %s263 = smul.addr %s262, 8
          %s264 = scalar_lea.vmem [#allocation5], %s263
          %s265 = smul.u32 2, %s30
          %s266 = ssub.s32 3, %s265
          %p267 = scmp.lt.s32.totalorder %s266, 2
          %s268 = scalar_select %p267, %s266, 2
          %s269 = smul.u32 64, %s268
          %s271 = ssub.s32 128, %s269
          %272 = vsyncadd %s261, %s271
          %p273 = scmp.ne.s32.totalorder 0, %s269
          %s274 = smul.addr %s29, 3
          %s275 = sadd.s32 %s265, %s274
          %s276 = smul.addr %s275, 64
          %s277 = scalar_lea.hbm %s0, %s276
          %s278 = smul.u32 4, %s268
          %s279 = sshll.u32 %s264, 4
          %s280 = int_to_ptr.vmem [resolvable:$true] %s279
          %s281 = sshll.u32 %s278, 4
          %285 = dma.hbm_to_vmem [thread:$0]  (%p273), %s277, %s281, %s280, %s261, 64, 64, 4
        $region36: #{tpu_custom_call.1} parent=31 // pred_fallthru
          _
        // Predicated region
        $region37: #{tpu_custom_call.1} parent=31 // pred_check
          %p286 = pneg %p88
        $region38: #{tpu_custom_call.1} parent=31 // pred_check_branch
          %288 = sbr.rel (%p286) target = $region40
        $region39: #{tpu_custom_call.1} parent=31 // pred_region
          %s289 = sand.u32 %s22, 1
          %s290 = scalar_lea.sflag [#allocation9], %s289
          %s291 = sand.u32 %s78, 1
          %s292 = smul.addr %s291, 4
          %s293 = scalar_lea.vmem [#allocation8], %s292
          %s294 = sadd.s32 %s30, 1
          %s295 = smul.u32 %s294, 2
          %s297 = ssub.s32 64, 64
          %298 = vsyncadd %s290, %s297
          %s299 = smul.addr %s29, 3
          %s300 = sadd.s32 %s295, %s299
          %s301 = smul.addr %s300, 64
          %s302 = scalar_lea.hbm %s1, %s301
          %s304 = sshll.u32 %s293, 4
          %s305 = int_to_ptr.vmem [resolvable:$true] %s304
          %307 = dma.hbm_to_vmem [thread:$0]  %s302, 64, %s305, %s290
        $region40: #{tpu_custom_call.1} parent=31 // pred_fallthru
          _
      $region32: #{tpu_custom_call.1} parent=5 // pred_fallthru
        _
      %p308 = scmp.le.s32.totalorder 1, %s22
      %p309 = scmp.lt.s32.totalorder %s22, 3
      %p310 = pnand %p308, %p309
      %p311 = pneg %p310
      // Predicated region
      $region41: #{tpu_custom_call.1} parent=5 // pred_check
        _
      $region42: #{tpu_custom_call.1} parent=5 // pred_check_branch
        %313 = sbr.rel (%p310) target = $region44
      $region43: #{tpu_custom_call.1} parent=5 // pred_region
        %s314 = ssub.s32 %s22, 1
        %s315 = sand.u32 %s49, 1
        %s316 = scalar_lea.sflag [#allocation6], %s315
        %s317 = sand.u32 %s49, 1
        %s318 = smul.addr %s317, 8
        %s319 = scalar_lea.vmem [#allocation5], %s318
        // Predicated region
        $region45: #{tpu_custom_call.1} parent=43 // pred_check
          %p320 = pneg %p62
        $region46: #{tpu_custom_call.1} parent=43 // pred_check_branch
          %322 = sbr.rel (%p320) target = $region48
        $region47: #{tpu_custom_call.1} parent=43 // pred_region
          %323 = dma.done %s316, 128
        $region48: #{tpu_custom_call.1} parent=43 // pred_fallthru
          _
        %s324 = sand.u32 %s27, 1
        %s325 = scalar_lea.sflag [#allocation9], %s324
        %s326 = sand.u32 %s81, 1
        %s327 = smul.addr %s326, 4
        %s328 = scalar_lea.vmem [#allocation8], %s327
        // Predicated region
        $region49: #{tpu_custom_call.1} parent=43 // pred_check
          %p329 = pneg %p94
        $region50: #{tpu_custom_call.1} parent=43 // pred_check_branch
          %331 = sbr.rel (%p329) target = $region52
        $region51: #{tpu_custom_call.1} parent=43 // pred_region
          %332 = dma.done %s325, 64
        $region52: #{tpu_custom_call.1} parent=43 // pred_fallthru
          _
        // Predicated region
        $region53: #{tpu_custom_call.1} parent=43 // pred_check
          %p333 = pneg %p115
        $region54: #{tpu_custom_call.1} parent=43 // pred_check_branch
          %335 = sbr.rel (%p333) target = $region56
        $region55: #{tpu_custom_call.1} parent=43 // pred_region
          %336 = dma.done [#allocation9], 3072
        $region56: #{tpu_custom_call.1} parent=43 // pred_fallthru
          _
        // Predicated region
        $region57: #{tpu_custom_call.1} parent=43 // pred_check
          %p337 = pneg %p157
        $region58: #{tpu_custom_call.1} parent=43 // pred_check_branch
          %339 = sbr.rel (%p337) target = $region60
        $region59: #{tpu_custom_call.1} parent=43 // pred_region
          %340 = dma.done [#allocation12], 3072
        $region60: #{tpu_custom_call.1} parent=43 // pred_fallthru
          _
        %s341 = sand.u32 %s49, 1
        %s342 = scalar_lea.sflag [#allocation6], %s341
        %s343 = sand.u32 %s49, 1
        %s344 = smul.addr %s343, 8
        %s345 = scalar_lea.vmem [#allocation5], %s344
        %p346 = pneg %p62
        %p347 = pneg %p59
        %s348 = sand.u32 %s27, 1
        %s349 = scalar_lea.sflag [#allocation9], %s348
        %s350 = sand.u32 %s81, 1
        %s351 = smul.addr %s350, 4
        %s352 = scalar_lea.vmem [#allocation8], %s351
        %p353 = pneg %p94
        %p354 = pneg %p91
        %p355 = pneg %p115
        %p356 = pneg %p112
        %p357 = pneg %p136
        %p358 = pneg %p133
        %p359 = pneg %p157
        %p360 = pneg %p154
        %p361 = pneg %p178
        %p362 = pneg %p175
        %p363 = pneg %p206
        %p364 = pneg %p203
        %s365 = sand.u32 %s193, 1
        %s366 = scalar_lea.sflag [#allocation7], %s365
        %s367 = sand.u32 %s193, 1
        %s368 = smul.addr %s367, 8
        %s369 = scalar_lea.vmem [#allocation13], %s368
        %s370 = smul.u32 2, %s32
        %s371 = ssub.s32 3, %s370
        %p372 = scmp.lt.s32.totalorder %s371, 2
        %s373 = scalar_select %p372, %s371, 2
        %s374 = smul.u32 64, %s373
        %s375 = sadd.s32 %s32, 1
        %s376 = smul.u32 %s375, 2
        %s377 = smul.u32 2, %s32
        %v379 = vld [vmem:[%s319] sm:$0xf]
        %v380 = vld [vmem:[%s319 + $0x4] sm:$0xf]
        %381 = vst [vmem:[#allocation2] sm:$0xf] %v379
        %382 = vst [vmem:[#allocation2 + $0x4] sm:$0xf] %v380
        %v383 = vld [vmem:[%s328] sm:$0xf]
        %384 = vst [vmem:[#allocation2 + $0x8] sm:$0xf] %v383
        %v385 = vld [vmem:[#allocation2] sm:$0xf]
        %v386 = vld [vmem:[#allocation2 + $0x4] sm:$0xf]
        %v387 = vld [vmem:[#allocation2 + $0x8] sm:$0xf]
        %v388 = vld [vmem:[%s3] sm:$0x1]
        %v390 = vlaneseq
        %v391 = vshrl.u32 %v390, 7
        %v392 = vsub.s32 0, %v391
        %v393 = vrot.slane %v388, %v392
        %395 = vst [vmem:[#allocation3] sm:$0xff] %v393
        %396 = vst [vmem:[#allocation3 + $0x8] sm:$0xff] %v393
        %397 = vst [vmem:[#allocation3 + $0x10] sm:$0x3] %v393
        %v398 = vld [vmem:[#allocation3] sm:$0xff]
        %v399 = vld [vmem:[#allocation3 + $0x8] sm:$0xff]
        %v400 = vld [vmem:[#allocation3 + $0x10] sm:$0x3]
        %v401 = vld [vmem:[#allocation10] sm:$0xf]
        %v402 = vld [vmem:[#allocation10 + $0x4] sm:$0xf]
        %v403 = vld [vmem:[#allocation10 + $0x8] sm:$0xf]
        %v404 = vld [vmem:[#allocation10 + $0xc] sm:$0xf]
        %v405 = vld [vmem:[#allocation10 + $0x10] sm:$0xf]
        %v406 = vld [vmem:[#allocation10 + $0x14] sm:$0xf]
        %v407 = vld [vmem:[#allocation10 + $0x18] sm:$0xf]
        %v408 = vld [vmem:[#allocation10 + $0x1c] sm:$0xf]
        %v409 = vld [vmem:[#allocation10 + $0x20] sm:$0xf]
        %v410 = vld [vmem:[#allocation10 + $0x24] sm:$0xf]
        %v411 = vld [vmem:[#allocation10 + $0x28] sm:$0xf]
        %v412 = vld [vmem:[#allocation10 + $0x2c] sm:$0xf]
        %v413 = vld [vmem:[#allocation10 + $0x30] sm:$0xf]
        %v414 = vld [vmem:[#allocation10 + $0x34] sm:$0xf]
        %v415 = vld [vmem:[#allocation10 + $0x38] sm:$0xf]
        %v416 = vld [vmem:[#allocation10 + $0x3c] sm:$0xf]
        %v420 = vunpack.c.l.b16 %v385
        %v421 = vunpack.c.l.b16 %v386
        %v422 = vunpack.c.l.b16 %v387
        %v423 = vpack.c.b16 %v421, %v420
        %v424 = vpack.c.b16 %v422, %v422
        %v443 = vunpack.c.l.b16 %v401
        %v444 = vunpack.c.l.b16 %v402
        %v445 = vunpack.c.l.b16 %v403
        %v446 = vunpack.c.l.b16 %v404
        %v447 = vunpack.c.l.b16 %v405
        %v448 = vunpack.c.l.b16 %v406
        %v449 = vunpack.c.l.b16 %v407
        %v450 = vunpack.c.l.b16 %v408
        %v451 = vunpack.c.l.b16 %v409
        %v452 = vunpack.c.l.b16 %v410
        %v453 = vunpack.c.l.b16 %v411
        %v454 = vunpack.c.l.b16 %v412
        %v455 = vunpack.c.l.b16 %v413
        %v456 = vunpack.c.l.b16 %v414
        %v457 = vunpack.c.l.b16 %v415
        %v458 = vunpack.c.l.b16 %v416
        %v459 = vpack.c.b16 %v444, %v443
        %v460 = vpack.c.b16 %v446, %v445
        %v461 = vpack.c.b16 %v448, %v447
        %v462 = vpack.c.b16 %v450, %v449
        %v463 = vpack.c.b16 %v452, %v451
        %v464 = vpack.c.b16 %v454, %v453
        %v465 = vpack.c.b16 %v456, %v455
        %v466 = vpack.c.b16 %v458, %v457
        %475 = vmatprep.subr.bf16.mxu0 0
        %476 = vmatpush1.bf16.msra.mxu0 %v466
        %477 = vmatprep.subr.bf16.mxu0 0
        %478 = vmatpush1.bf16.msra.mxu0 %v465
        %479 = vmatprep.subr.bf16.mxu0 0
        %480 = vmatpush1.bf16.msra.mxu0 %v464
        %481 = vmatprep.subr.bf16.mxu0 0
        %482 = vmatpush1.bf16.msra.mxu0 %v463
        %483 = vmatprep.subr.bf16.mxu0 0
        %484 = vmatpush1.bf16.msra.mxu0 %v462
        %485 = vmatprep.subr.bf16.mxu0 0
        %486 = vmatpush1.bf16.msra.mxu0 %v461
        %487 = vmatprep.subr.bf16.mxu0 0
        %488 = vmatpush1.bf16.msra.mxu0 %v460
        %489 = vmatprep.subr.bf16.mxu0 0
        %490 = vmatpush1.bf16.msra.mxu0 %v459
        %491 = vmatprep.subr.bf16.mxu0 0
        %492 = vmatpush2.bf16.msra.mxu0 0
        %493 = vmatprep.subr.bf16.mxu0 0
        %494 = vmatpush2.bf16.msra.mxu0 0
        %495 = vmatprep.subr.bf16.mxu0 0
        %496 = vmatpush2.bf16.msra.mxu0 0
        %497 = vmatprep.subr.bf16.mxu0 0
        %498 = vmatpush2.bf16.msra.mxu0 0
        %499 = vmatprep.subr.bf16.mxu0 0
        %500 = vmatpush2.bf16.msra.mxu0 0
        %501 = vmatprep.subr.bf16.mxu0 0
        %502 = vmatpush2.bf16.msra.mxu0 0
        %503 = vmatprep.subr.bf16.mxu0 0
        %504 = vmatpush2.bf16.msra.mxu0 0
        %505 = vmatprep.subr.bf16.mxu0 0
        %506 = vmatpush2.bf16.msra.mxu0 0
        %507 = vmatprep.mubr.bf16.mxu0 0
        %508 = vmatmul.mubr.bf16.gmra.mxu0 %v423
        %v509 = vpop.f32.mrf.mxu0
        %v510 = vadd.f32 0.0, %v509
        %v511 = vpop.f32.mrf.mxu0
        %v512 = vpop.f32.mrf.mxu0
        %v513 = vadd.f32 0.0, %v512
        %v514 = vpop.f32.mrf.mxu0
        %515 = vmatprep.mubr.bf16.mxu0 0
        %516 = vmatmul.mubr.bf16.gmra.mxu0 %v424
        %v517 = vpop.f32.mrf.mxu0
        %v518 = vadd.f32 0.0, %v517
        %v519 = vpop.f32.mrf.mxu0
        %v520 = vpop.f32.mrf.mxu0
        %v521 = vpop.f32.mrf.mxu0
        %522 = vdwg.mxu0
        %v523 = vadd.f32 %v398, %v510
        %v524 = vadd.f32 %v399, %v513
        %v525 = vadd.f32 %v400, %v518
        %526 = vst [vmem:[#allocation3] sm:$0xff] %v523
        %527 = vst [vmem:[#allocation3 + $0x8] sm:$0xff] %v524
        %528 = vst [vmem:[#allocation3 + $0x10] sm:$0x3] %v525
        %v529 = vld [vmem:[#allocation3] sm:$0xff]
        %v530 = vld [vmem:[#allocation3 + $0x8] sm:$0xff]
        %v531 = vld [vmem:[#allocation3 + $0x10] sm:$0x3]
        %s532 = scalar_lea.vmem [#allocation10], 64
        %v533 = vld [vmem:[%s532] sm:$0xf]
        %v534 = vld [vmem:[%s532 + $0x4] sm:$0xf]
        %v535 = vld [vmem:[%s532 + $0x8] sm:$0xf]
        %v536 = vld [vmem:[%s532 + $0xc] sm:$0xf]
        %v537 = vld [vmem:[%s532 + $0x10] sm:$0xf]
        %v538 = vld [vmem:[%s532 + $0x14] sm:$0xf]
        %v539 = vld [vmem:[%s532 + $0x18] sm:$0xf]
        %v540 = vld [vmem:[%s532 + $0x1c] sm:$0xf]
        %v541 = vld [vmem:[%s532 + $0x20] sm:$0xf]
        %v542 = vld [vmem:[%s532 + $0x24] sm:$0xf]
        %v543 = vld [vmem:[%s532 + $0x28] sm:$0xf]
        %v544 = vld [vmem:[%s532 + $0x2c] sm:$0xf]
        %v545 = vld [vmem:[%s532 + $0x30] sm:$0xf]
        %v546 = vld [vmem:[%s532 + $0x34] sm:$0xf]
        %v547 = vld [vmem:[%s532 + $0x38] sm:$0xf]
        %v548 = vld [vmem:[%s532 + $0x3c] sm:$0xf]
        %vm549 = vsmask.f32 7424
        %v551 = vshrl.u32 %v423, 16
        %v553 = vshll.u32 %v423, 16
        %v555 = vrot.slane %v553, 1
        %v556 = vor.u32 %v551, %v555
        %v558 = vshll.u32 %v424, 16
        %v560 = vrot.slane %v558, 1
        %v561 = vsel %vm549, %v556, %v560
        %v562 = vshrl.u32 %v424, 16
        %v564 = vor.u32 %v562, %v560
        %v583 = vunpack.c.l.b16 %v533
        %v584 = vunpack.c.l.b16 %v534
        %v585 = vunpack.c.l.b16 %v535
        %v586 = vunpack.c.l.b16 %v536
        %v587 = vunpack.c.l.b16 %v537
        %v588 = vunpack.c.l.b16 %v538
        %v589 = vunpack.c.l.b16 %v539
        %v590 = vunpack.c.l.b16 %v540
        %v591 = vunpack.c.l.b16 %v541
        %v592 = vunpack.c.l.b16 %v542
        %v593 = vunpack.c.l.b16 %v543
        %v594 = vunpack.c.l.b16 %v544
        %v595 = vunpack.c.l.b16 %v545
        %v596 = vunpack.c.l.b16 %v546
        %v597 = vunpack.c.l.b16 %v547
        %v598 = vunpack.c.l.b16 %v548
        %v599 = vpack.c.b16 %v584, %v583
        %v600 = vpack.c.b16 %v586, %v585
        %v601 = vpack.c.b16 %v588, %v587
        %v602 = vpack.c.b16 %v590, %v589
        %v603 = vpack.c.b16 %v592, %v591
        %v604 = vpack.c.b16 %v594, %v593
        %v605 = vpack.c.b16 %v596, %v595
        %v606 = vpack.c.b16 %v598, %v597
        %615 = vmatprep.subr.bf16.mxu0 0
        %616 = vmatpush1.bf16.msra.mxu0 %v606
        %617 = vmatprep.subr.bf16.mxu0 0
        %618 = vmatpush1.bf16.msra.mxu0 %v605
        %619 = vmatprep.subr.bf16.mxu0 0
        %620 = vmatpush1.bf16.msra.mxu0 %v604
        %621 = vmatprep.subr.bf16.mxu0 0
        %622 = vmatpush1.bf16.msra.mxu0 %v603
        %623 = vmatprep.subr.bf16.mxu0 0
        %624 = vmatpush1.bf16.msra.mxu0 %v602
        %625 = vmatprep.subr.bf16.mxu0 0
        %626 = vmatpush1.bf16.msra.mxu0 %v601
        %627 = vmatprep.subr.bf16.mxu0 0
        %628 = vmatpush1.bf16.msra.mxu0 %v600
        %629 = vmatprep.subr.bf16.mxu0 0
        %630 = vmatpush1.bf16.msra.mxu0 %v599
        %631 = vmatprep.subr.bf16.mxu0 0
        %632 = vmatpush2.bf16.msra.mxu0 0
        %633 = vmatprep.subr.bf16.mxu0 0
        %634 = vmatpush2.bf16.msra.mxu0 0
        %635 = vmatprep.subr.bf16.mxu0 0
        %636 = vmatpush2.bf16.msra.mxu0 0
        %637 = vmatprep.subr.bf16.mxu0 0
        %638 = vmatpush2.bf16.msra.mxu0 0
        %639 = vmatprep.subr.bf16.mxu0 0
        %640 = vmatpush2.bf16.msra.mxu0 0
        %641 = vmatprep.subr.bf16.mxu0 0
        %642 = vmatpush2.bf16.msra.mxu0 0
        %643 = vmatprep.subr.bf16.mxu0 0
        %644 = vmatpush2.bf16.msra.mxu0 0
        %645 = vmatprep.subr.bf16.mxu0 0
        %646 = vmatpush2.bf16.msra.mxu0 0
        %647 = vmatprep.mubr.bf16.mxu0 0
        %648 = vmatmul.mubr.bf16.gmra.mxu0 %v561
        %v649 = vpop.f32.mrf.mxu0
        %v650 = vadd.f32 0.0, %v649
        %v651 = vpop.f32.mrf.mxu0
        %v652 = vpop.f32.mrf.mxu0
        %v653 = vadd.f32 0.0, %v652
        %v654 = vpop.f32.mrf.mxu0
        %655 = vmatprep.mubr.bf16.mxu0 0
        %656 = vmatmul.mubr.bf16.gmra.mxu0 %v564
        %v657 = vpop.f32.mrf.mxu0
        %v658 = vadd.f32 0.0, %v657
        %v659 = vpop.f32.mrf.mxu0
        %v660 = vpop.f32.mrf.mxu0
        %v661 = vpop.f32.mrf.mxu0
        %662 = vdwg.mxu0
        %v663 = vadd.f32 %v529, %v650
        %v664 = vadd.f32 %v530, %v653
        %v665 = vadd.f32 %v531, %v658
        %666 = vst [vmem:[#allocation3] sm:$0xff] %v663
        %667 = vst [vmem:[#allocation3 + $0x8] sm:$0xff] %v664
        %668 = vst [vmem:[#allocation3 + $0x10] sm:$0x3] %v665
        %v669 = vld [vmem:[#allocation3] sm:$0xff]
        %v670 = vld [vmem:[#allocation3 + $0x8] sm:$0xff]
        %v671 = vld [vmem:[#allocation3 + $0x10] sm:$0x3]
        %s672 = scalar_lea.vmem [#allocation10], 128
        %v673 = vld [vmem:[%s672] sm:$0xf]
        %v674 = vld [vmem:[%s672 + $0x4] sm:$0xf]
        %v675 = vld [vmem:[%s672 + $0x8] sm:$0xf]
        %v676 = vld [vmem:[%s672 + $0xc] sm:$0xf]
        %v677 = vld [vmem:[%s672 + $0x10] sm:$0xf]
        %v678 = vld [vmem:[%s672 + $0x14] sm:$0xf]
        %v679 = vld [vmem:[%s672 + $0x18] sm:$0xf]
        %v680 = vld [vmem:[%s672 + $0x1c] sm:$0xf]
        %v681 = vld [vmem:[%s672 + $0x20] sm:$0xf]
        %v682 = vld [vmem:[%s672 + $0x24] sm:$0xf]
        %v683 = vld [vmem:[%s672 + $0x28] sm:$0xf]
        %v684 = vld [vmem:[%s672 + $0x2c] sm:$0xf]
        %v685 = vld [vmem:[%s672 + $0x30] sm:$0xf]
        %v686 = vld [vmem:[%s672 + $0x34] sm:$0xf]
        %v687 = vld [vmem:[%s672 + $0x38] sm:$0xf]
        %v688 = vld [vmem:[%s672 + $0x3c] sm:$0xf]
        %vm689 = vcmask 1046528
        %v690 = vrot.slane %v423, 1
        %v691 = vrot.slane %v424, 1
        %v692 = vsel %vm689, %v690, %v691
        %v711 = vunpack.c.l.b16 %v673
        %v712 = vunpack.c.l.b16 %v674
        %v713 = vunpack.c.l.b16 %v675
        %v714 = vunpack.c.l.b16 %v676
        %v715 = vunpack.c.l.b16 %v677
        %v716 = vunpack.c.l.b16 %v678
        %v717 = vunpack.c.l.b16 %v679
        %v718 = vunpack.c.l.b16 %v680
        %v719 = vunpack.c.l.b16 %v681
        %v720 = vunpack.c.l.b16 %v682
        %v721 = vunpack.c.l.b16 %v683
        %v722 = vunpack.c.l.b16 %v684
        %v723 = vunpack.c.l.b16 %v685
        %v724 = vunpack.c.l.b16 %v686
        %v725 = vunpack.c.l.b16 %v687
        %v726 = vunpack.c.l.b16 %v688
        %v727 = vpack.c.b16 %v712, %v711
        %v728 = vpack.c.b16 %v714, %v713
        %v729 = vpack.c.b16 %v716, %v715
        %v730 = vpack.c.b16 %v718, %v717
        %v731 = vpack.c.b16 %v720, %v719
        %v732 = vpack.c.b16 %v722, %v721
        %v733 = vpack.c.b16 %v724, %v723
        %v734 = vpack.c.b16 %v726, %v725
        %743 = vmatprep.subr.bf16.mxu0 0
        %744 = vmatpush1.bf16.msra.mxu0 %v734
        %745 = vmatprep.subr.bf16.mxu0 0
        %746 = vmatpush1.bf16.msra.mxu0 %v733
        %747 = vmatprep.subr.bf16.mxu0 0
        %748 = vmatpush1.bf16.msra.mxu0 %v732
        %749 = vmatprep.subr.bf16.mxu0 0
        %750 = vmatpush1.bf16.msra.mxu0 %v731
        %751 = vmatprep.subr.bf16.mxu0 0
        %752 = vmatpush1.bf16.msra.mxu0 %v730
        %753 = vmatprep.subr.bf16.mxu0 0
        %754 = vmatpush1.bf16.msra.mxu0 %v729
        %755 = vmatprep.subr.bf16.mxu0 0
        %756 = vmatpush1.bf16.msra.mxu0 %v728
        %757 = vmatprep.subr.bf16.mxu0 0
        %758 = vmatpush1.bf16.msra.mxu0 %v727
        %759 = vmatprep.subr.bf16.mxu0 0
        %760 = vmatpush2.bf16.msra.mxu0 0
        %761 = vmatprep.subr.bf16.mxu0 0
        %762 = vmatpush2.bf16.msra.mxu0 0
        %763 = vmatprep.subr.bf16.mxu0 0
        %764 = vmatpush2.bf16.msra.mxu0 0
        %765 = vmatprep.subr.bf16.mxu0 0
        %766 = vmatpush2.bf16.msra.mxu0 0
        %767 = vmatprep.subr.bf16.mxu0 0
        %768 = vmatpush2.bf16.msra.mxu0 0
        %769 = vmatprep.subr.bf16.mxu0 0
        %770 = vmatpush2.bf16.msra.mxu0 0
        %771 = vmatprep.subr.bf16.mxu0 0
        %772 = vmatpush2.bf16.msra.mxu0 0
        %773 = vmatprep.subr.bf16.mxu0 0
        %774 = vmatpush2.bf16.msra.mxu0 0
        %775 = vmatprep.mubr.bf16.mxu0 0
        %776 = vmatmul.mubr.bf16.gmra.mxu0 %v692
        %v777 = vpop.f32.mrf.mxu0
        %v778 = vadd.f32 0.0, %v777
        %v779 = vpop.f32.mrf.mxu0
        %v780 = vpop.f32.mrf.mxu0
        %v781 = vadd.f32 0.0, %v780
        %v782 = vpop.f32.mrf.mxu0
        %783 = vmatprep.mubr.bf16.mxu0 0
        %784 = vmatmul.mubr.bf16.gmra.mxu0 %v691
        %v785 = vpop.f32.mrf.mxu0
        %v786 = vadd.f32 0.0, %v785
        %v787 = vpop.f32.mrf.mxu0
        %v788 = vpop.f32.mrf.mxu0
        %v789 = vpop.f32.mrf.mxu0
        %790 = vdwg.mxu0
        %v791 = vadd.f32 %v669, %v778
        %v792 = vadd.f32 %v670, %v781
        %v793 = vadd.f32 %v671, %v786
        %794 = vst [vmem:[#allocation3] sm:$0xff] %v791
        %795 = vst [vmem:[#allocation3 + $0x8] sm:$0xff] %v792
        %796 = vst [vmem:[#allocation3 + $0x10] sm:$0x3] %v793
        %v797 = vld [vmem:[#allocation3] sm:$0xff]
        %v798 = vld [vmem:[#allocation3 + $0x8] sm:$0xff]
        %v799 = vld [vmem:[#allocation3 + $0x10] sm:$0x3]
        %v800 = vmax.f32 %v797, 0.0
        %v801 = vmax.f32 %v798, 0.0
        %v802 = vmax.f32 %v799, 0.0
        %v803 = vlaneseq
        %v804 = vshrl.u32 %v803, 7
        %v805 = vadd.s32 %v804, 8
        %v806 = vadd.s32 %v804, 16
        %s807 = smul.u32 %s32, 16
        %s808 = ssub.s32 %s807, 1
        %v809 = vstv %s808
        %v810 = vadd.s32 %v809, %v804
        %v811 = vadd.s32 %v809, %v805
        %v812 = vadd.s32 %v809, %v806
        %vm813 = vcmp.ge.s32.totalorder %v810, 0
        %vm814 = vcmp.ge.s32.totalorder %v811, 0
        %vm815 = vcmp.ge.s32.totalorder %v812, 0
        %vm816 = vcmp.lt.s32.totalorder %v810, 16
        %vm817 = vcmp.lt.s32.totalorder %v811, 16
        %vm818 = vcmp.lt.s32.totalorder %v812, 16
        %vm819 = vmand %vm813, %vm816
        %vm820 = vmand %vm814, %vm817
        %vm821 = vmand %vm815, %vm818
        %v822 = vsel %vm819, 1, 0
        %v823 = vsel %vm820, 1, 0
        %v824 = vsel %vm821, 1, 0
        %vm825 = vcmp.eq.s32.totalorder %v822, 1
        %vm826 = vcmp.eq.s32.totalorder %v823, 1
        %vm827 = vcmp.eq.s32.totalorder %v824, 1
        %v828 = vsel %vm825, %v800, 0.0
        %v829 = vsel %vm826, %v801, 0.0
        %v830 = vsel %vm827, %v802, 0.0
        %v831 = vpack.c.bf16 %v829, %v828
        %v832 = vpack.c.bf16 %v830, %v830
        %v833 = vld [vmem:[%s5] sm:$0x1]
        %v835 = vlaneseq
        %v836 = vshrl.u32 %v835, 7
        %v837 = vsub.s32 0, %v836
        %v838 = vrot.slane %v833, %v837
        %840 = vst [vmem:[#allocation4] sm:$0xff] %v838
        %841 = vst [vmem:[#allocation4 + $0x8] sm:$0xff] %v838
        %v842 = vld [vmem:[#allocation4] sm:$0xff]
        %v843 = vld [vmem:[#allocation4 + $0x8] sm:$0xff]
        %v844 = vld [vmem:[#allocation11] sm:$0xf]
        %v845 = vld [vmem:[#allocation11 + $0x4] sm:$0xf]
        %v846 = vld [vmem:[#allocation11 + $0x8] sm:$0xf]
        %v847 = vld [vmem:[#allocation11 + $0xc] sm:$0xf]
        %v848 = vld [vmem:[#allocation11 + $0x10] sm:$0xf]
        %v849 = vld [vmem:[#allocation11 + $0x14] sm:$0xf]
        %v850 = vld [vmem:[#allocation11 + $0x18] sm:$0xf]
        %v851 = vld [vmem:[#allocation11 + $0x1c] sm:$0xf]
        %v852 = vld [vmem:[#allocation11 + $0x20] sm:$0xf]
        %v853 = vld [vmem:[#allocation11 + $0x24] sm:$0xf]
        %v854 = vld [vmem:[#allocation11 + $0x28] sm:$0xf]
        %v855 = vld [vmem:[#allocation11 + $0x2c] sm:$0xf]
        %v856 = vld [vmem:[#allocation11 + $0x30] sm:$0xf]
        %v857 = vld [vmem:[#allocation11 + $0x34] sm:$0xf]
        %v858 = vld [vmem:[#allocation11 + $0x38] sm:$0xf]
        %v859 = vld [vmem:[#allocation11 + $0x3c] sm:$0xf]
        %v876 = vunpack.c.l.b16 %v844
        %v877 = vunpack.c.l.b16 %v845
        %v878 = vunpack.c.l.b16 %v846
        %v879 = vunpack.c.l.b16 %v847
        %v880 = vunpack.c.l.b16 %v848
        %v881 = vunpack.c.l.b16 %v849
        %v882 = vunpack.c.l.b16 %v850
        %v883 = vunpack.c.l.b16 %v851
        %v884 = vunpack.c.l.b16 %v852
        %v885 = vunpack.c.l.b16 %v853
        %v886 = vunpack.c.l.b16 %v854
        %v887 = vunpack.c.l.b16 %v855
        %v888 = vunpack.c.l.b16 %v856
        %v889 = vunpack.c.l.b16 %v857
        %v890 = vunpack.c.l.b16 %v858
        %v891 = vunpack.c.l.b16 %v859
        %v892 = vpack.c.b16 %v877, %v876
        %v893 = vpack.c.b16 %v879, %v878
        %v894 = vpack.c.b16 %v881, %v880
        %v895 = vpack.c.b16 %v883, %v882
        %v896 = vpack.c.b16 %v885, %v884
        %v897 = vpack.c.b16 %v887, %v886
        %v898 = vpack.c.b16 %v889, %v888
        %v899 = vpack.c.b16 %v891, %v890
        %908 = vmatprep.subr.bf16.mxu0 0
        %909 = vmatpush1.bf16.msra.mxu0 %v899
        %910 = vmatprep.subr.bf16.mxu0 0
        %911 = vmatpush1.bf16.msra.mxu0 %v898
        %912 = vmatprep.subr.bf16.mxu0 0
        %913 = vmatpush1.bf16.msra.mxu0 %v897
        %914 = vmatprep.subr.bf16.mxu0 0
        %915 = vmatpush1.bf16.msra.mxu0 %v896
        %916 = vmatprep.subr.bf16.mxu0 0
        %917 = vmatpush1.bf16.msra.mxu0 %v895
        %918 = vmatprep.subr.bf16.mxu0 0
        %919 = vmatpush1.bf16.msra.mxu0 %v894
        %920 = vmatprep.subr.bf16.mxu0 0
        %921 = vmatpush1.bf16.msra.mxu0 %v893
        %922 = vmatprep.subr.bf16.mxu0 0
        %923 = vmatpush1.bf16.msra.mxu0 %v892
        %924 = vmatprep.subr.bf16.mxu0 0
        %925 = vmatpush2.bf16.msra.mxu0 0
        %926 = vmatprep.subr.bf16.mxu0 0
        %927 = vmatpush2.bf16.msra.mxu0 0
        %928 = vmatprep.subr.bf16.mxu0 0
        %929 = vmatpush2.bf16.msra.mxu0 0
        %930 = vmatprep.subr.bf16.mxu0 0
        %931 = vmatpush2.bf16.msra.mxu0 0
        %932 = vmatprep.subr.bf16.mxu0 0
        %933 = vmatpush2.bf16.msra.mxu0 0
        %934 = vmatprep.subr.bf16.mxu0 0
        %935 = vmatpush2.bf16.msra.mxu0 0
        %936 = vmatprep.subr.bf16.mxu0 0
        %937 = vmatpush2.bf16.msra.mxu0 0
        %938 = vmatprep.subr.bf16.mxu0 0
        %939 = vmatpush2.bf16.msra.mxu0 0
        %940 = vmatprep.mubr.bf16.mxu0 0
        %941 = vmatmul.mubr.bf16.gmra.mxu0 %v831
        %v942 = vpop.f32.mrf.mxu0
        %v943 = vadd.f32 0.0, %v942
        %v944 = vpop.f32.mrf.mxu0
        %v945 = vpop.f32.mrf.mxu0
        %v946 = vadd.f32 0.0, %v945
        %v947 = vpop.f32.mrf.mxu0
        %948 = vdwg.mxu0
        %v949 = vadd.f32 %v842, %v943
        %v950 = vadd.f32 %v843, %v946
        %951 = vst [vmem:[#allocation4] sm:$0xff] %v949
        %952 = vst [vmem:[#allocation4 + $0x8] sm:$0xff] %v950
        %v953 = vld [vmem:[#allocation4] sm:$0xff]
        %v954 = vld [vmem:[#allocation4 + $0x8] sm:$0xff]
        %s955 = scalar_lea.vmem [#allocation11], 64
        %v956 = vld [vmem:[%s955] sm:$0xf]
        %v957 = vld [vmem:[%s955 + $0x4] sm:$0xf]
        %v958 = vld [vmem:[%s955 + $0x8] sm:$0xf]
        %v959 = vld [vmem:[%s955 + $0xc] sm:$0xf]
        %v960 = vld [vmem:[%s955 + $0x10] sm:$0xf]
        %v961 = vld [vmem:[%s955 + $0x14] sm:$0xf]
        %v962 = vld [vmem:[%s955 + $0x18] sm:$0xf]
        %v963 = vld [vmem:[%s955 + $0x1c] sm:$0xf]
        %v964 = vld [vmem:[%s955 + $0x20] sm:$0xf]
        %v965 = vld [vmem:[%s955 + $0x24] sm:$0xf]
        %v966 = vld [vmem:[%s955 + $0x28] sm:$0xf]
        %v967 = vld [vmem:[%s955 + $0x2c] sm:$0xf]
        %v968 = vld [vmem:[%s955 + $0x30] sm:$0xf]
        %v969 = vld [vmem:[%s955 + $0x34] sm:$0xf]
        %v970 = vld [vmem:[%s955 + $0x38] sm:$0xf]
        %v971 = vld [vmem:[%s955 + $0x3c] sm:$0xf]
        %v973 = vshrl.u32 %v831, 16
        %v975 = vshll.u32 %v831, 16
        %v977 = vrot.slane %v975, 1
        %v978 = vor.u32 %v973, %v977
        %v980 = vshll.u32 %v832, 16
        %v982 = vrot.slane %v980, 1
        %v983 = vsel %vm549, %v978, %v982
        %v1001 = vunpack.c.l.b16 %v956
        %v1002 = vunpack.c.l.b16 %v957
        %v1003 = vunpack.c.l.b16 %v958
        %v1004 = vunpack.c.l.b16 %v959
        %v1005 = vunpack.c.l.b16 %v960
        %v1006 = vunpack.c.l.b16 %v961
        %v1007 = vunpack.c.l.b16 %v962
        %v1008 = vunpack.c.l.b16 %v963
        %v1009 = vunpack.c.l.b16 %v964
        %v1010 = vunpack.c.l.b16 %v965
        %v1011 = vunpack.c.l.b16 %v966
        %v1012 = vunpack.c.l.b16 %v967
        %v1013 = vunpack.c.l.b16 %v968
        %v1014 = vunpack.c.l.b16 %v969
        %v1015 = vunpack.c.l.b16 %v970
        %v1016 = vunpack.c.l.b16 %v971
        %v1017 = vpack.c.b16 %v1002, %v1001
        %v1018 = vpack.c.b16 %v1004, %v1003
        %v1019 = vpack.c.b16 %v1006, %v1005
        %v1020 = vpack.c.b16 %v1008, %v1007
        %v1021 = vpack.c.b16 %v1010, %v1009
        %v1022 = vpack.c.b16 %v1012, %v1011
        %v1023 = vpack.c.b16 %v1014, %v1013
        %v1024 = vpack.c.b16 %v1016, %v1015
        %1033 = vmatprep.subr.bf16.mxu0 0
        %1034 = vmatpush1.bf16.msra.mxu0 %v1024
        %1035 = vmatprep.subr.bf16.mxu0 0
        %1036 = vmatpush1.bf16.msra.mxu0 %v1023
        %1037 = vmatprep.subr.bf16.mxu0 0
        %1038 = vmatpush1.bf16.msra.mxu0 %v1022
        %1039 = vmatprep.subr.bf16.mxu0 0
        %1040 = vmatpush1.bf16.msra.mxu0 %v1021
        %1041 = vmatprep.subr.bf16.mxu0 0
        %1042 = vmatpush1.bf16.msra.mxu0 %v1020
        %1043 = vmatprep.subr.bf16.mxu0 0
        %1044 = vmatpush1.bf16.msra.mxu0 %v1019
        %1045 = vmatprep.subr.bf16.mxu0 0
        %1046 = vmatpush1.bf16.msra.mxu0 %v1018
        %1047 = vmatprep.subr.bf16.mxu0 0
        %1048 = vmatpush1.bf16.msra.mxu0 %v1017
        %1049 = vmatprep.subr.bf16.mxu0 0
        %1050 = vmatpush2.bf16.msra.mxu0 0
        %1051 = vmatprep.subr.bf16.mxu0 0
        %1052 = vmatpush2.bf16.msra.mxu0 0
        %1053 = vmatprep.subr.bf16.mxu0 0
        %1054 = vmatpush2.bf16.msra.mxu0 0
        %1055 = vmatprep.subr.bf16.mxu0 0
        %1056 = vmatpush2.bf16.msra.mxu0 0
        %1057 = vmatprep.subr.bf16.mxu0 0
        %1058 = vmatpush2.bf16.msra.mxu0 0
        %1059 = vmatprep.subr.bf16.mxu0 0
        %1060 = vmatpush2.bf16.msra.mxu0 0
        %1061 = vmatprep.subr.bf16.mxu0 0
        %1062 = vmatpush2.bf16.msra.mxu0 0
        %1063 = vmatprep.subr.bf16.mxu0 0
        %1064 = vmatpush2.bf16.msra.mxu0 0
        %1065 = vmatprep.mubr.bf16.mxu0 0
        %1066 = vmatmul.mubr.bf16.gmra.mxu0 %v983
        %v1067 = vpop.f32.mrf.mxu0
        %v1068 = vadd.f32 0.0, %v1067
        %v1069 = vpop.f32.mrf.mxu0
        %v1070 = vpop.f32.mrf.mxu0
        %v1071 = vadd.f32 0.0, %v1070
        %v1072 = vpop.f32.mrf.mxu0
        %1073 = vdwg.mxu0
        %v1074 = vadd.f32 %v953, %v1068
        %v1075 = vadd.f32 %v954, %v1071
        %1076 = vst [vmem:[#allocation4] sm:$0xff] %v1074
        %1077 = vst [vmem:[#allocation4 + $0x8] sm:$0xff] %v1075
        %v1078 = vld [vmem:[#allocation4] sm:$0xff]
        %v1079 = vld [vmem:[#allocation4 + $0x8] sm:$0xff]
        %s1080 = scalar_lea.vmem [#allocation11], 128
        %v1081 = vld [vmem:[%s1080] sm:$0xf]
        %v1082 = vld [vmem:[%s1080 + $0x4] sm:$0xf]
        %v1083 = vld [vmem:[%s1080 + $0x8] sm:$0xf]
        %v1084 = vld [vmem:[%s1080 + $0xc] sm:$0xf]
        %v1085 = vld [vmem:[%s1080 + $0x10] sm:$0xf]
        %v1086 = vld [vmem:[%s1080 + $0x14] sm:$0xf]
        %v1087 = vld [vmem:[%s1080 + $0x18] sm:$0xf]
        %v1088 = vld [vmem:[%s1080 + $0x1c] sm:$0xf]
        %v1089 = vld [vmem:[%s1080 + $0x20] sm:$0xf]
        %v1090 = vld [vmem:[%s1080 + $0x24] sm:$0xf]
        %v1091 = vld [vmem:[%s1080 + $0x28] sm:$0xf]
        %v1092 = vld [vmem:[%s1080 + $0x2c] sm:$0xf]
        %v1093 = vld [vmem:[%s1080 + $0x30] sm:$0xf]
        %v1094 = vld [vmem:[%s1080 + $0x34] sm:$0xf]
        %v1095 = vld [vmem:[%s1080 + $0x38] sm:$0xf]
        %v1096 = vld [vmem:[%s1080 + $0x3c] sm:$0xf]
        %v1099 = vrot.slane %v831, 1
        %v1100 = vrot.slane %v832, 1
        %v1101 = vsel %vm689, %v1099, %v1100
        %v1119 = vunpack.c.l.b16 %v1081
        %v1120 = vunpack.c.l.b16 %v1082
        %v1121 = vunpack.c.l.b16 %v1083
        %v1122 = vunpack.c.l.b16 %v1084
        %v1123 = vunpack.c.l.b16 %v1085
        %v1124 = vunpack.c.l.b16 %v1086
        %v1125 = vunpack.c.l.b16 %v1087
        %v1126 = vunpack.c.l.b16 %v1088
        %v1127 = vunpack.c.l.b16 %v1089
        %v1128 = vunpack.c.l.b16 %v1090
        %v1129 = vunpack.c.l.b16 %v1091
        %v1130 = vunpack.c.l.b16 %v1092
        %v1131 = vunpack.c.l.b16 %v1093
        %v1132 = vunpack.c.l.b16 %v1094
        %v1133 = vunpack.c.l.b16 %v1095
        %v1134 = vunpack.c.l.b16 %v1096
        %v1135 = vpack.c.b16 %v1120, %v1119
        %v1136 = vpack.c.b16 %v1122, %v1121
        %v1137 = vpack.c.b16 %v1124, %v1123
        %v1138 = vpack.c.b16 %v1126, %v1125
        %v1139 = vpack.c.b16 %v1128, %v1127
        %v1140 = vpack.c.b16 %v1130, %v1129
        %v1141 = vpack.c.b16 %v1132, %v1131
        %v1142 = vpack.c.b16 %v1134, %v1133
        %1151 = vmatprep.subr.bf16.mxu0 0
        %1152 = vmatpush1.bf16.msra.mxu0 %v1142
        %1153 = vmatprep.subr.bf16.mxu0 0
        %1154 = vmatpush1.bf16.msra.mxu0 %v1141
        %1155 = vmatprep.subr.bf16.mxu0 0
        %1156 = vmatpush1.bf16.msra.mxu0 %v1140
        %1157 = vmatprep.subr.bf16.mxu0 0
        %1158 = vmatpush1.bf16.msra.mxu0 %v1139
        %1159 = vmatprep.subr.bf16.mxu0 0
        %1160 = vmatpush1.bf16.msra.mxu0 %v1138
        %1161 = vmatprep.subr.bf16.mxu0 0
        %1162 = vmatpush1.bf16.msra.mxu0 %v1137
        %1163 = vmatprep.subr.bf16.mxu0 0
        %1164 = vmatpush1.bf16.msra.mxu0 %v1136
        %1165 = vmatprep.subr.bf16.mxu0 0
        %1166 = vmatpush1.bf16.msra.mxu0 %v1135
        %1167 = vmatprep.subr.bf16.mxu0 0
        %1168 = vmatpush2.bf16.msra.mxu0 0
        %1169 = vmatprep.subr.bf16.mxu0 0
        %1170 = vmatpush2.bf16.msra.mxu0 0
        %1171 = vmatprep.subr.bf16.mxu0 0
        %1172 = vmatpush2.bf16.msra.mxu0 0
        %1173 = vmatprep.subr.bf16.mxu0 0
        %1174 = vmatpush2.bf16.msra.mxu0 0
        %1175 = vmatprep.subr.bf16.mxu0 0
        %1176 = vmatpush2.bf16.msra.mxu0 0
        %1177 = vmatprep.subr.bf16.mxu0 0
        %1178 = vmatpush2.bf16.msra.mxu0 0
        %1179 = vmatprep.subr.bf16.mxu0 0
        %1180 = vmatpush2.bf16.msra.mxu0 0
        %1181 = vmatprep.subr.bf16.mxu0 0
        %1182 = vmatpush2.bf16.msra.mxu0 0
        %1183 = vmatprep.mubr.bf16.mxu0 0
        %1184 = vmatmul.mubr.bf16.gmra.mxu0 %v1101
        %v1185 = vpop.f32.mrf.mxu0
        %v1186 = vadd.f32 0.0, %v1185
        %v1187 = vpop.f32.mrf.mxu0
        %v1188 = vpop.f32.mrf.mxu0
        %v1189 = vadd.f32 0.0, %v1188
        %v1190 = vpop.f32.mrf.mxu0
        %1191 = vdwg.mxu0
        %v1192 = vadd.f32 %v1078, %v1186
        %v1193 = vadd.f32 %v1079, %v1189
        %1194 = vst [vmem:[#allocation4] sm:$0xff] %v1192
        %1195 = vst [vmem:[#allocation4 + $0x8] sm:$0xff] %v1193
        %v1196 = vld [vmem:[#allocation4] sm:$0xff]
        %v1197 = vld [vmem:[#allocation4 + $0x8] sm:$0xff]
        %v1198 = vmax.f32 %v1196, 0.0
        %v1199 = vmax.f32 %v1197, 0.0
        %v1200 = vpack.c.bf16 %v1199, %v1198
        %v1202 = vunpack.c.l.b16 %v1200
        %v1203 = vunpack.c.h.b16 %v1200
        %v1204 = vpack.c.b16 %v1202, %v1202
        %v1205 = vpack.c.b16 %v1203, %v1203
        %1208 = vst [vmem:[%s369] sm:$0xf] %v1204
        %1209 = vst [vmem:[%s369 + $0x4] sm:$0xf] %v1205
        %s1210 = sand.u32 %s193, 1
        %s1211 = scalar_lea.sflag [#allocation7], %s1210
        %s1212 = sand.u32 %s193, 1
        %s1213 = smul.addr %s1212, 8
        %s1214 = scalar_lea.vmem [#allocation13], %s1213
        // Predicated region
        $region61: #{tpu_custom_call.1} parent=43 // pred_check
          %p1215 = pneg %p203
        $region62: #{tpu_custom_call.1} parent=43 // pred_check_branch
          %1217 = sbr.rel (%p1215) target = $region64
        $region63: #{tpu_custom_call.1} parent=43 // pred_region
          %s1218 = smul.u32 2, %s32
          %s1220 = ssub.s32 128, 128
          %1221 = vsyncadd %s1211, %s1220
          %s1222 = smul.addr %s31, 2
          %s1223 = sadd.s32 %s1218, %s1222
          %s1224 = smul.addr %s1223, 64
          %s1225 = scalar_lea.hbm %s6, %s1224
          %s1226 = sshll.u32 %s1214, 4
          %s1227 = int_to_ptr.vmem [resolvable:$true] %s1226
          %1232 = dma.vmem_to_hbm [thread:$0]  %s1227, 128, %s1225, %s1211, 64, 64, 4
        $region64: #{tpu_custom_call.1} parent=43 // pred_fallthru
          _
      $region44: #{tpu_custom_call.1} parent=5 // pred_fallthru
        _
      %p1233 = scmp.le.s32.totalorder 2, %s22
      // Predicated region
      $region65: #{tpu_custom_call.1} parent=5 // pred_check
        %p1234 = pneg %p1233
      $region66: #{tpu_custom_call.1} parent=5 // pred_check_branch
        %1236 = sbr.rel (%p1234) target = $region68
      $region67: #{tpu_custom_call.1} parent=5 // pred_region
        %s1237 = ssub.s32 %s22, 2
        // Predicated region
        $region69: #{tpu_custom_call.1} parent=67 // pred_check
          %p1238 = pneg %p209
        $region70: #{tpu_custom_call.1} parent=67 // pred_check_branch
          %1240 = sbr.rel (%p1238) target = $region72
        $region71: #{tpu_custom_call.1} parent=67 // pred_region
          %s1241 = sand.u32 %s194, 1
          %s1242 = scalar_lea.sflag [#allocation7], %s1241
          %s1243 = sand.u32 %s194, 1
          %s1244 = smul.addr %s1243, 8
          %s1245 = scalar_lea.vmem [#allocation13], %s1244
          %1246 = dma.done %s1242, 128
        $region72: #{tpu_custom_call.1} parent=67 // pred_fallthru
          _
      $region68: #{tpu_custom_call.1} parent=5 // pred_fallthru
        _
    $region6: #{tpu_custom_call.1} parent=1 // loop_footer
      %s26 = sadd.s32 1, %s22
    $region7: #{tpu_custom_call.1} parent=1 // loop_footer_branch
      %21 = sbr.rel target = $region3
    $region8: #{tpu_custom_call.1} parent=1 // loop_exit
      _
    %1247 = vsyncpa [#allocation6], 1
    %s1248 = scalar_lea.sflag [#allocation6], 1
    %1249 = vsyncpa %s1248, 1
    %1250 = vsyncpa [#allocation9], 1
    %s1251 = scalar_lea.sflag [#allocation9], 1
    %1252 = vsyncpa %s1251, 1
    %1253 = vsyncpa [#allocation12], 1
    %1254 = vsyncpa [#allocation7], 1
    %s1255 = scalar_lea.sflag [#allocation7], 1
    %1256 = vsyncpa %s1255, 1

// kernel: tpu_custom_call.1
$region0: #{tpu_custom_call.1}
  #allocation0 [shape = 'u32[]', space=smem, size = 0x4, offset = 0x4, fixed_abs, tag = 'smem constant byte address 0x4 - core index']
  #allocation1 [shape = 'u32[144,128]{1,0:T(1,128)}', space=vmem, size = 0x12000, scoped, tag = 'internal scratch']
  #allocation2 [shape = 'bf16[24,128]{1,0:T(8,128)(2,1)}', space=vmem, size = 0x1800, scoped, tag = 'scratch operand']
  #allocation3 [shape = 'f32[18,128]{1,0:T(8,128)}', space=vmem, size = 0x3000, scoped, tag = 'scratch operand']
  #allocation4 [shape = 'f32[16,128]{1,0:T(8,128)}', space=vmem, size = 0x2000, scoped, tag = 'scratch operand']
  %s0 = inlined_call_operand.hbm [shape: bf16[2,24,128], index: 0, kind: input, shape index: {}]
  %s1 = inlined_call_operand.hbm [shape: bf16[2,24,128], index: 1, kind: input, shape index: {}]
  %s2 = inlined_call_operand.hbm [shape: bf16[3,128,128], index: 2, kind: input, shape index: {}]
  %s3 = inlined_call_operand.vmem [shape: f32[1,128], index: 3, kind: input, shape index: {}]
  %s4 = inlined_call_operand.hbm [shape: bf16[3,128,128], index: 4, kind: input, shape index: {}]
  %s5 = inlined_call_operand.vmem [shape: f32[1,128], index: 5, kind: input, shape index: {}]
  %s6 = inlined_call_operand.hbm [shape: bf16[2,16,128], index: 6, kind: output, shape index: {}]
  %s7 = sld [smem:[#allocation0]]
  $region73: #{tpu_custom_call.1} parent=0
    _
  %s9 = ssub.s32 1, %s7
  %s10 = scalar_select 0, %s9, %s7
  $region1: #{tpu_custom_call.1} parent=0
    #allocation5 [shape = 'u8[8192]{0}', space=vmem, size = 0x2000, scoped, tag = 'input window, operand 0']
    #allocation6 [shape = 's32[2]{0}', space=sflag, size = 0x8, scoped, tag = 'scoped memory for tpu_custom_call.1']
    #allocation7 [shape = 's32[2]{0}', space=sflag, size = 0x8, scoped, tag = 'scoped memory for tpu_custom_call.1']
    #allocation8 [shape = 'u8[4096]{0}', space=vmem, size = 0x1000, scoped, tag = 'input window, operand 1']
    #allocation9 [shape = 's32[2]{0}', space=sflag, size = 0x8, scoped, tag = 'scoped memory for tpu_custom_call.1']
    #allocation10 [shape = 'u8[98304]{0}', space=vmem, size = 0x18000, scoped, tag = 'input window, operand 2, single buffered']
    #allocation11 [shape = 'u8[98304]{0}', space=vmem, size = 0x18000, scoped, tag = 'input window, operand 4, single buffered']
    #allocation12 [shape = 's32[1]{0}', space=sflag, size = 0x4, scoped, tag = 'scoped memory for tpu_custom_call.1']
    #allocation13 [shape = 'u8[8192]{0}', space=vmem, size = 0x2000, scoped, tag = 'output window, operand 0']
    %11 = vsyncpa [#allocation6], 0
    %s12 = scalar_lea.sflag [#allocation6], 1
    %13 = vsyncpa %s12, 0
    %14 = vsyncpa [#allocation9], 0
    %s15 = scalar_lea.sflag [#allocation9], 1
    %16 = vsyncpa %s15, 0
    %17 = vsyncpa [#allocation12], 0
    %18 = vsyncpa [#allocation7], 0
    %s19 = scalar_lea.sflag [#allocation7], 1
    %20 = vsyncpa %s19, 0
    loop: start=0, step=1, limit=4
    $region2: #{tpu_custom_call.1} parent=1 // loop_pre_header
      _
    $region3: #{tpu_custom_call.1} parent=1 // loop_header
      %s22 = sphi 0, %s26
      %p23 = scmp.ge.s32.totalorder %s22, 4
      %s29 = sphi 0, %s41
      %s30 = sphi 0, %s37
      %s31 = sphi 0, %s29
      %s32 = sphi 0, %s30
      %s33 = sphi 0, %s31
      %s34 = sphi 0, %s32
      %s46 = sphi 0, %s48
      %s49 = sphi 0, %s46
      %s50 = sphi 0, %s49
      %s66 = sphi 0, %s50
      %s78 = sphi 0, %s80
      %s81 = sphi 0, %s78
      %s82 = sphi 0, %s81
      %s98 = sphi 0, %s82
      %s102 = sphi 0, %s102
      %s104 = sphi 0, %s102
      %s105 = sphi 0, %s104
      %s119 = sphi 0, %s105
      %s123 = sphi 0, %s123
      %s125 = sphi 0, %s123
      %s126 = sphi 0, %s125
      %s140 = sphi 0, %s126
      %s144 = sphi 0, %s144
      %s146 = sphi 0, %s144
      %s147 = sphi 0, %s146
      %s161 = sphi 0, %s147
      %s165 = sphi 0, %s165
      %s167 = sphi 0, %s165
      %s168 = sphi 0, %s167
      %s182 = sphi 0, %s168
      %s190 = sphi 0, %s192
      %s193 = sphi 0, %s190
      %s194 = sphi 0, %s193
      %s210 = sphi 0, %s194
    $region4: #{tpu_custom_call.1} parent=1 // loop_header_branch
      %25 = sbr.rel (%p23) target = $region8
    $region5: #{tpu_custom_call.1} parent=1 // loop_body
      %s27 = ssub.s32 %s22, 1
      %s28 = ssub.s32 %s22, 2
      %s35 = sadd.s32 1, %s30
      %p36 = scmp.ge.s32.totalorder %s35, 1
      %s37 = scalar_select %p36, 0, %s35
      %s38 = sadd.s32 1, %s29
      %s39 = scalar_select %p36, %s38, %s29
      %p40 = scmp.ge.s32.totalorder %s39, 2
      %s41 = scalar_select %p40, 0, %s39
      %s42 = ssub.s32 %s29, %s41
      %s43 = ssub.s32 %s30, %s37
      %s44 = sor.u32 %s42, %s43
      %p45 = scmp.eq.s32.totalorder %s44, 0
      %s47 = sadd.s32 %s46, 1
      %s48 = scalar_select %p45, %s46, %s47
      %p51 = pneg %p45
      %p52 = scmp.eq.s32.totalorder %s22, 1
      %p53 = por %p51, %p52
      %p54 = scmp.ne.s32.totalorder %s46, %s49
      %p55 = scmp.eq.s32.totalorder %s22, 0
      %p56 = por %p54, %p55
      %p57 = scmp.ne.s32.totalorder %s46, %s49
      %p58 = scmp.eq.s32.totalorder %s27, 1
      %p59 = por %p57, %p58
      %p60 = scmp.ne.s32.totalorder %s49, %s50
      %p61 = scmp.eq.s32.totalorder %s27, 0
      %p62 = por %p60, %p61
      %p63 = scmp.ne.s32.totalorder %s49, %s50
      %p64 = scmp.eq.s32.totalorder %s28, 1
      %p65 = por %p63, %p64
      %p67 = scmp.ne.s32.totalorder %s50, %s66
      %p68 = scmp.eq.s32.totalorder %s28, 0
      %p69 = por %p67, %p68
      %s70 = sadd.s32 %s30, 1
      %s71 = smul.u32 %s70, 2
      %s72 = sadd.s32 %s37, 1
      %s73 = smul.u32 %s72, 2
      %s74 = ssub.s32 %s29, %s41
      %s75 = ssub.s32 %s71, %s73
      %s76 = sor.u32 %s74, %s75
      %p77 = scmp.eq.s32.totalorder %s76, 0
      %s79 = sadd.s32 %s78, 1
      %s80 = scalar_select %p77, %s78, %s79
      %p83 = pneg %p77
      %p84 = scmp.eq.s32.totalorder %s22, 1
      %p85 = por %p83, %p84
      %p86 = scmp.ne.s32.totalorder %s78, %s81
      %p87 = scmp.eq.s32.totalorder %s22, 0
      %p88 = por %p86, %p87
      %p89 = scmp.ne.s32.totalorder %s78, %s81
      %p90 = scmp.eq.s32.totalorder %s27, 1
      %p91 = por %p89, %p90
      %p92 = scmp.ne.s32.totalorder %s81, %s82
      %p93 = scmp.eq.s32.totalorder %s27, 0
      %p94 = por %p92, %p93
      %p95 = scmp.ne.s32.totalorder %s81, %s82
      %p96 = scmp.eq.s32.totalorder %s28, 1
      %p97 = por %p95, %p96
      %p99 = scmp.ne.s32.totalorder %s82, %s98
      %p100 = scmp.eq.s32.totalorder %s28, 0
      %p101 = por %p99, %p100
      %s103 = sadd.s32 %s102, 1
      %p106 = scmp.eq.s32.totalorder %s22, 1
      %p107 = scmp.ne.s32.totalorder %s102, %s104
      %p108 = scmp.eq.s32.totalorder %s22, 0
      %p109 = por %p107, %p108
      %p110 = scmp.ne.s32.totalorder %s102, %s104
      %p111 = scmp.eq.s32.totalorder %s27, 1
      %p112 = por %p110, %p111
      %p113 = scmp.ne.s32.totalorder %s104, %s105
      %p114 = scmp.eq.s32.totalorder %s27, 0
      %p115 = por %p113, %p114
      %p116 = scmp.ne.s32.totalorder %s104, %s105
      %p117 = scmp.eq.s32.totalorder %s28, 1
      %p118 = por %p116, %p117
      %p120 = scmp.ne.s32.totalorder %s105, %s119
      %p121 = scmp.eq.s32.totalorder %s28, 0
      %p122 = por %p120, %p121
      %s124 = sadd.s32 %s123, 1
      %p127 = scmp.eq.s32.totalorder %s22, 1
      %p128 = scmp.ne.s32.totalorder %s123, %s125
      %p129 = scmp.eq.s32.totalorder %s22, 0
      %p130 = por %p128, %p129
      %p131 = scmp.ne.s32.totalorder %s123, %s125
      %p132 = scmp.eq.s32.totalorder %s27, 1
      %p133 = por %p131, %p132
      %p134 = scmp.ne.s32.totalorder %s125, %s126
      %p135 = scmp.eq.s32.totalorder %s27, 0
      %p136 = por %p134, %p135
      %p137 = scmp.ne.s32.totalorder %s125, %s126
      %p138 = scmp.eq.s32.totalorder %s28, 1
      %p139 = por %p137, %p138
      %p141 = scmp.ne.s32.totalorder %s126, %s140
      %p142 = scmp.eq.s32.totalorder %s28, 0
      %p143 = por %p141, %p142
      %s145 = sadd.s32 %s144, 1
      %p148 = scmp.eq.s32.totalorder %s22, 1
      %p149 = scmp.ne.s32.totalorder %s144, %s146
      %p150 = scmp.eq.s32.totalorder %s22, 0
      %p151 = por %p149, %p150
      %p152 = scmp.ne.s32.totalorder %s144, %s146
      %p153 = scmp.eq.s32.totalorder %s27, 1
      %p154 = por %p152, %p153
      %p155 = scmp.ne.s32.totalorder %s146, %s147
      %p156 = scmp.eq.s32.totalorder %s27, 0
      %p157 = por %p155, %p156
      %p158 = scmp.ne.s32.totalorder %s146, %s147
      %p159 = scmp.eq.s32.totalorder %s28, 1
      %p160 = por %p158, %p159
      %p162 = scmp.ne.s32.totalorder %s147, %s161
      %p163 = scmp.eq.s32.totalorder %s28, 0
      %p164 = por %p162, %p163
      %s166 = sadd.s32 %s165, 1
      %p169 = scmp.eq.s32.totalorder %s22, 1
      %p170 = scmp.ne.s32.totalorder %s165, %s167
      %p171 = scmp.eq.s32.totalorder %s22, 0
      %p172 = por %p170, %p171
      %p173 = scmp.ne.s32.totalorder %s165, %s167
      %p174 = scmp.eq.s32.totalorder %s27, 1
      %p175 = por %p173, %p174
      %p176 = scmp.ne.s32.totalorder %s167, %s168
      %p177 = scmp.eq.s32.totalorder %s27, 0
      %p178 = por %p176, %p177
      %p179 = scmp.ne.s32.totalorder %s167, %s168
      %p180 = scmp.eq.s32.totalorder %s28, 1
      %p181 = por %p179, %p180
      %p183 = scmp.ne.s32.totalorder %s168, %s182
      %p184 = scmp.eq.s32.totalorder %s28, 0
      %p185 = por %p183, %p184
      %s186 = ssub.s32 %s29, %s41
      %s187 = ssub.s32 %s30, %s37
      %s188 = sor.u32 %s186, %s187
      %p189 = scmp.eq.s32.totalorder %s188, 0
      %s191 = sadd.s32 %s190, 1
      %s192 = scalar_select %p189, %s190, %s191
      %p195 = pneg %p189
      %p196 = scmp.eq.s32.totalorder %s22, 1
      %p197 = por %p195, %p196
      %p198 = scmp.ne.s32.totalorder %s190, %s193
      %p199 = scmp.eq.s32.totalorder %s22, 0
      %p200 = por %p198, %p199
      %p201 = scmp.ne.s32.totalorder %s190, %s193
      %p202 = scmp.eq.s32.totalorder %s27, 1
      %p203 = por %p201, %p202
      %p204 = scmp.ne.s32.totalorder %s193, %s194
      %p205 = scmp.eq.s32.totalorder %s27, 0
      %p206 = por %p204, %p205
      %p207 = scmp.ne.s32.totalorder %s193, %s194
      %p208 = scmp.eq.s32.totalorder %s28, 1
      %p209 = por %p207, %p208
      %p211 = scmp.ne.s32.totalorder %s194, %s210
      %p212 = scmp.eq.s32.totalorder %s28, 0
      %p213 = por %p211, %p212
      %p214 = scmp.le.s32.totalorder 1, %s22
      %p215 = scmp.lt.s32.totalorder %s22, 3
      %p216 = pnand %p214, %p215
      %p217 = pneg %p216
      // Predicated region
      $region9: #{tpu_custom_call.1} parent=5 // pred_check
        _
      $region10: #{tpu_custom_call.1} parent=5 // pred_check_branch
        %219 = sbr.rel (%p216) target = $region12
      $region11: #{tpu_custom_call.1} parent=5 // pred_region
        %s220 = ssub.s32 %s22, 1
        // Predicated region
        $region13: #{tpu_custom_call.1} parent=11 // pred_check
          %p221 = pneg %p115
        $region14: #{tpu_custom_call.1} parent=11 // pred_check_branch
          %223 = sbr.rel (%p221) target = $region16
        $region15: #{tpu_custom_call.1} parent=11 // pred_region
          %s225 = ssub.s32 3072, 3072
          %226 = vsyncadd [#allocation9], %s225
          %s227 = sshll.u32 [#allocation10], 4
          %s228 = int_to_ptr.vmem [resolvable:$true] %s227
          %233 = dma.hbm_to_vmem [thread:$0]  %s2, 3072, %s228, [#allocation9], 64, 64, 4
        $region16: #{tpu_custom_call.1} parent=11 // pred_fallthru
          _
        // Predicated region
        $region17: #{tpu_custom_call.1} parent=11 // pred_check
          %p234 = pneg %p136
        $region18: #{tpu_custom_call.1} parent=11 // pred_check_branch
          %236 = sbr.rel (%p234) target = $region20
        $region19: #{tpu_custom_call.1} parent=11 // pred_region
          _
        $region20: #{tpu_custom_call.1} parent=11 // pred_fallthru
          _
        // Predicated region
        $region21: #{tpu_custom_call.1} parent=11 // pred_check
          %p237 = pneg %p157
        $region22: #{tpu_custom_call.1} parent=11 // pred_check_branch
          %239 = sbr.rel (%p237) target = $region24
        $region23: #{tpu_custom_call.1} parent=11 // pred_region
          %s241 = ssub.s32 3072, 3072
          %242 = vsyncadd [#allocation12], %s241
          %s243 = sshll.u32 [#allocation11], 4
          %s244 = int_to_ptr.vmem [resolvable:$true] %s243
          %249 = dma.hbm_to_vmem [thread:$0]  %s4, 3072, %s244, [#allocation12], 64, 64, 4
        $region24: #{tpu_custom_call.1} parent=11 // pred_fallthru
          _
        // Predicated region
        $region25: #{tpu_custom_call.1} parent=11 // pred_check
          %p250 = pneg %p178
        $region26: #{tpu_custom_call.1} parent=11 // pred_check_branch
          %252 = sbr.rel (%p250) target = $region28
        $region27: #{tpu_custom_call.1} parent=11 // pred_region
          _
        $region28: #{tpu_custom_call.1} parent=11 // pred_fallthru
          _
      $region12: #{tpu_custom_call.1} parent=5 // pred_fallthru
        _
      %p253 = scmp.lt.s32.totalorder %s22, 2
      // Predicated region
      $region29: #{tpu_custom_call.1} parent=5 // pred_check
        %p254 = pneg %p253
      $region30: #{tpu_custom_call.1} parent=5 // pred_check_branch
        %256 = sbr.rel (%p254) target = $region32
      $region31: #{tpu_custom_call.1} parent=5 // pred_region
        // Predicated region
        $region33: #{tpu_custom_call.1} parent=31 // pred_check
          %p257 = pneg %p56
        $region34: #{tpu_custom_call.1} parent=31 // pred_check_branch
          %259 = sbr.rel (%p257) target = $region36
        $region35: #{tpu_custom_call.1} parent=31 // pred_region
          %s260 = sand.u32 %s46, 1
          %s261 = scalar_lea.sflag [#allocation6], %s260
          %s262 = sand.u32 %s46, 1
          %s263 = smul.addr %s262, 8
          %s264 = scalar_lea.vmem [#allocation5], %s263
          %s265 = smul.u32 2, %s30
          %s266 = ssub.s32 3, %s265
          %p267 = scmp.lt.s32.totalorder %s266, 2
          %s268 = scalar_select %p267, %s266, 2
          %s269 = smul.u32 64, %s268
          %s271 = ssub.s32 128, %s269
          %272 = vsyncadd %s261, %s271
          %p273 = scmp.ne.s32.totalorder 0, %s269
          %s274 = smul.addr %s29, 3
          %s275 = sadd.s32 %s265, %s274
          %s276 = smul.addr %s275, 64
          %s277 = scalar_lea.hbm %s0, %s276
          %s278 = smul.u32 4, %s268
          %s279 = sshll.u32 %s264, 4
          %s280 = int_to_ptr.vmem [resolvable:$true] %s279
          %s281 = sshll.u32 %s278, 4
          %285 = dma.hbm_to_vmem [thread:$0]  (%p273), %s277, %s281, %s280, %s261, 64, 64, 4
        $region36: #{tpu_custom_call.1} parent=31 // pred_fallthru
          _
        // Predicated region
        $region37: #{tpu_custom_call.1} parent=31 // pred_check
          %p286 = pneg %p88
        $region38: #{tpu_custom_call.1} parent=31 // pred_check_branch
          %288 = sbr.rel (%p286) target = $region40
        $region39: #{tpu_custom_call.1} parent=31 // pred_region
          %s289 = sand.u32 %s22, 1
          %s290 = scalar_lea.sflag [#allocation9], %s289
          %s291 = sand.u32 %s78, 1
          %s292 = smul.addr %s291, 4
          %s293 = scalar_lea.vmem [#allocation8], %s292
          %s294 = sadd.s32 %s30, 1
          %s295 = smul.u32 %s294, 2
          %s297 = ssub.s32 64, 64
          %298 = vsyncadd %s290, %s297
          %s299 = smul.addr %s29, 3
          %s300 = sadd.s32 %s295, %s299
          %s301 = smul.addr %s300, 64
          %s302 = scalar_lea.hbm %s1, %s301
          %s304 = sshll.u32 %s293, 4
          %s305 = int_to_ptr.vmem [resolvable:$true] %s304
          %307 = dma.hbm_to_vmem [thread:$0]  %s302, 64, %s305, %s290
        $region40: #{tpu_custom_call.1} parent=31 // pred_fallthru
          _
      $region32: #{tpu_custom_call.1} parent=5 // pred_fallthru
        _
      %p308 = scmp.le.s32.totalorder 1, %s22
      %p309 = scmp.lt.s32.totalorder %s22, 3
      %p310 = pnand %p308, %p309
      %p311 = pneg %p310
      // Predicated region
      $region41: #{tpu_custom_call.1} parent=5 // pred_check
        _
      $region42: #{tpu_custom_call.1} parent=5 // pred_check_branch
        %313 = sbr.rel (%p310) target = $region44
      $region43: #{tpu_custom_call.1} parent=5 // pred_region
        %s314 = ssub.s32 %s22, 1
        %s315 = sand.u32 %s49, 1
        %s316 = scalar_lea.sflag [#allocation6], %s315
        %s317 = sand.u32 %s49, 1
        %s318 = smul.addr %s317, 8
        %s319 = scalar_lea.vmem [#allocation5], %s318
        // Predicated region
        $region45: #{tpu_custom_call.1} parent=43 // pred_check
          %p320 = pneg %p62
        $region46: #{tpu_custom_call.1} parent=43 // pred_check_branch
          %322 = sbr.rel (%p320) target = $region48
        $region47: #{tpu_custom_call.1} parent=43 // pred_region
          %323 = dma.done %s316, 128
        $region48: #{tpu_custom_call.1} parent=43 // pred_fallthru
          _
        %s324 = sand.u32 %s27, 1
        %s325 = scalar_lea.sflag [#allocation9], %s324
        %s326 = sand.u32 %s81, 1
        %s327 = smul.addr %s326, 4
        %s328 = scalar_lea.vmem [#allocation8], %s327
        // Predicated region
        $region49: #{tpu_custom_call.1} parent=43 // pred_check
          %p329 = pneg %p94
        $region50: #{tpu_custom_call.1} parent=43 // pred_check_branch
          %331 = sbr.rel (%p329) target = $region52
        $region51: #{tpu_custom_call.1} parent=43 // pred_region
          %332 = dma.done %s325, 64
        $region52: #{tpu_custom_call.1} parent=43 // pred_fallthru
          _
        // Predicated region
        $region53: #{tpu_custom_call.1} parent=43 // pred_check
          %p333 = pneg %p115
        $region54: #{tpu_custom_call.1} parent=43 // pred_check_branch
          %335 = sbr.rel (%p333) target = $region56
        $region55: #{tpu_custom_call.1} parent=43 // pred_region
          %336 = dma.done [#allocation9], 3072
        $region56: #{tpu_custom_call.1} parent=43 // pred_fallthru
          _
        // Predicated region
        $region57: #{tpu_custom_call.1} parent=43 // pred_check
          %p337 = pneg %p157
        $region58: #{tpu_custom_call.1} parent=43 // pred_check_branch
          %339 = sbr.rel (%p337) target = $region60
        $region59: #{tpu_custom_call.1} parent=43 // pred_region
          %340 = dma.done [#allocation12], 3072
        $region60: #{tpu_custom_call.1} parent=43 // pred_fallthru
          _
        %s341 = sand.u32 %s49, 1
        %s342 = scalar_lea.sflag [#allocation6], %s341
        %s343 = sand.u32 %s49, 1
        %s344 = smul.addr %s343, 8
        %s345 = scalar_lea.vmem [#allocation5], %s344
        %p346 = pneg %p62
        %p347 = pneg %p59
        %s348 = sand.u32 %s27, 1
        %s349 = scalar_lea.sflag [#allocation9], %s348
        %s350 = sand.u32 %s81, 1
        %s351 = smul.addr %s350, 4
        %s352 = scalar_lea.vmem [#allocation8], %s351
        %p353 = pneg %p94
        %p354 = pneg %p91
        %p355 = pneg %p115
        %p356 = pneg %p112
        %p357 = pneg %p136
        %p358 = pneg %p133
        %p359 = pneg %p157
        %p360 = pneg %p154
        %p361 = pneg %p178
        %p362 = pneg %p175
        %p363 = pneg %p206
        %p364 = pneg %p203
        %s365 = sand.u32 %s193, 1
        %s366 = scalar_lea.sflag [#allocation7], %s365
        %s367 = sand.u32 %s193, 1
        %s368 = smul.addr %s367, 8
        %s369 = scalar_lea.vmem [#allocation13], %s368
        %s370 = smul.u32 2, %s32
        %s371 = ssub.s32 3, %s370
        %p372 = scmp.lt.s32.totalorder %s371, 2
        %s373 = scalar_select %p372, %s371, 2
        %s374 = smul.u32 64, %s373
        %s375 = sadd.s32 %s32, 1
        %s376 = smul.u32 %s375, 2
        %s377 = smul.u32 2, %s32
        %v379 = vld [vmem:[%s319] sm:$0xf]
        %v380 = vld [vmem:[%s319 + $0x4] sm:$0xf]
        %381 = vst [vmem:[#allocation2] sm:$0xf] %v379
        %382 = vst [vmem:[#allocation2 + $0x4] sm:$0xf] %v380
        %v383 = vld [vmem:[%s328] sm:$0xf]
        %384 = vst [vmem:[#allocation2 + $0x8] sm:$0xf] %v383
        %v385 = vld [vmem:[#allocation2] sm:$0xf]
        %v386 = vld [vmem:[#allocation2 + $0x4] sm:$0xf]
        %v387 = vld [vmem:[#allocation2 + $0x8] sm:$0xf]
        %v388 = vld [vmem:[%s3] sm:$0x1]
        %v390 = vlaneseq
        %v391 = vshrl.u32 %v390, 7
        %v392 = vsub.s32 0, %v391
        %v393 = vrot.slane %v388, %v392
        %395 = vst [vmem:[#allocation3] sm:$0xff] %v393
        %396 = vst [vmem:[#allocation3 + $0x8] sm:$0xff] %v393
        %397 = vst [vmem:[#allocation3 + $0x10] sm:$0x3] %v393
        %v398 = vld [vmem:[#allocation3] sm:$0xff]
        %v399 = vld [vmem:[#allocation3 + $0x8] sm:$0xff]
        %v400 = vld [vmem:[#allocation3 + $0x10] sm:$0x3]
        %v401 = vld [vmem:[#allocation10] sm:$0xf]
        %v402 = vld [vmem:[#allocation10 + $0x4] sm:$0xf]
        %v403 = vld [vmem:[#allocation10 + $0x8] sm:$0xf]
        %v404 = vld [vmem:[#allocation10 + $0xc] sm:$0xf]
        %v405 = vld [vmem:[#allocation10 + $0x10] sm:$0xf]
        %v406 = vld [vmem:[#allocation10 + $0x14] sm:$0xf]
        %v407 = vld [vmem:[#allocation10 + $0x18] sm:$0xf]
        %v408 = vld [vmem:[#allocation10 + $0x1c] sm:$0xf]
        %v409 = vld [vmem:[#allocation10 + $0x20] sm:$0xf]
        %v410 = vld [vmem:[#allocation10 + $0x24] sm:$0xf]
        %v411 = vld [vmem:[#allocation10 + $0x28] sm:$0xf]
        %v412 = vld [vmem:[#allocation10 + $0x2c] sm:$0xf]
        %v413 = vld [vmem:[#allocation10 + $0x30] sm:$0xf]
        %v414 = vld [vmem:[#allocation10 + $0x34] sm:$0xf]
        %v415 = vld [vmem:[#allocation10 + $0x38] sm:$0xf]
        %v416 = vld [vmem:[#allocation10 + $0x3c] sm:$0xf]
        %v420 = vunpack.c.l.b16 %v385
        %v421 = vunpack.c.l.b16 %v386
        %v422 = vunpack.c.l.b16 %v387
        %v423 = vpack.c.b16 %v421, %v420
        %v424 = vpack.c.b16 %v422, %v422
        %v443 = vunpack.c.l.b16 %v401
        %v444 = vunpack.c.l.b16 %v402
        %v445 = vunpack.c.l.b16 %v403
        %v446 = vunpack.c.l.b16 %v404
        %v447 = vunpack.c.l.b16 %v405
        %v448 = vunpack.c.l.b16 %v406
        %v449 = vunpack.c.l.b16 %v407
        %v450 = vunpack.c.l.b16 %v408
        %v451 = vunpack.c.l.b16 %v409
        %v452 = vunpack.c.l.b16 %v410
        %v453 = vunpack.c.l.b16 %v411
        %v454 = vunpack.c.l.b16 %v412
        %v455 = vunpack.c.l.b16 %v413
        %v456 = vunpack.c.l.b16 %v414
        %v457 = vunpack.c.l.b16 %v415
        %v458 = vunpack.c.l.b16 %v416
        %v459 = vpack.c.b16 %v444, %v443
        %v460 = vpack.c.b16 %v446, %v445
        %v461 = vpack.c.b16 %v448, %v447
        %v462 = vpack.c.b16 %v450, %v449
        %v463 = vpack.c.b16 %v452, %v451
        %v464 = vpack.c.b16 %v454, %v453
        %v465 = vpack.c.b16 %v456, %v455
        %v466 = vpack.c.b16 %v458, %v457
        %475 = vmatprep.subr.bf16.mxu0 0
        %476 = vmatpush1.bf16.msra.mxu0 %v466
        %477 = vmatprep.subr.bf16.mxu0 0
        %478 = vmatpush1.bf16.msra.mxu0 %v465
        %479 = vmatprep.subr.bf16.mxu0 0
        %480 = vmatpush1.bf16.msra.mxu0 %v464
        %481 = vmatprep.subr.bf16.mxu0 0
        %482 = vmatpush1.bf16.msra.mxu0 %v463
        %483 = vmatprep.subr.bf16.mxu0 0
        %484 = vmatpush1.bf16.msra.mxu0 %v462
        %485 = vmatprep.subr.bf16.mxu0 0
        %486 = vmatpush1.bf16.msra.mxu0 %v461
        %487 = vmatprep.subr.bf16.mxu0 0
        %488 = vmatpush1.bf16.msra.mxu0 %v460
        %489 = vmatprep.subr.bf16.mxu0 0
        %490 = vmatpush1.bf16.msra.mxu0 %v459
        %491 = vmatprep.subr.bf16.mxu0 0
        %492 = vmatpush2.bf16.msra.mxu0 0
        %493 = vmatprep.subr.bf16.mxu0 0
        %494 = vmatpush2.bf16.msra.mxu0 0
        %495 = vmatprep.subr.bf16.mxu0 0
        %496 = vmatpush2.bf16.msra.mxu0 0
        %497 = vmatprep.subr.bf16.mxu0 0
        %498 = vmatpush2.bf16.msra.mxu0 0
        %499 = vmatprep.subr.bf16.mxu0 0
        %500 = vmatpush2.bf16.msra.mxu0 0
        %501 = vmatprep.subr.bf16.mxu0 0
        %502 = vmatpush2.bf16.msra.mxu0 0
        %503 = vmatprep.subr.bf16.mxu0 0
        %504 = vmatpush2.bf16.msra.mxu0 0
        %505 = vmatprep.subr.bf16.mxu0 0
        %506 = vmatpush2.bf16.msra.mxu0 0
        %507 = vmatprep.mubr.bf16.mxu0 0
        %508 = vmatmul.mubr.bf16.gmra.mxu0 %v423
        %v509 = vpop.f32.mrf.mxu0
        %v510 = vadd.f32 0.0, %v509
        %v511 = vpop.f32.mrf.mxu0
        %v512 = vpop.f32.mrf.mxu0
        %v513 = vadd.f32 0.0, %v512
        %v514 = vpop.f32.mrf.mxu0
        %515 = vmatprep.mubr.bf16.mxu0 0
        %516 = vmatmul.mubr.bf16.gmra.mxu0 %v424
        %v517 = vpop.f32.mrf.mxu0
        %v518 = vadd.f32 0.0, %v517
        %v519 = vpop.f32.mrf.mxu0
        %v520 = vpop.f32.mrf.mxu0
        %v521 = vpop.f32.mrf.mxu0
        %522 = vdwg.mxu0
        %v523 = vadd.f32 %v398, %v510
        %v524 = vadd.f32 %v399, %v513
        %v525 = vadd.f32 %v400, %v518
        %526 = vst [vmem:[#allocation3] sm:$0xff] %v523
        %527 = vst [vmem:[#allocation3 + $0x8] sm:$0xff] %v524
        %528 = vst [vmem:[#allocation3 + $0x10] sm:$0x3] %v525
        %v529 = vld [vmem:[#allocation3] sm:$0xff]
        %v530 = vld [vmem:[#allocation3 + $0x8] sm:$0xff]
        %v531 = vld [vmem:[#allocation3 + $0x10] sm:$0x3]
        %s532 = scalar_lea.vmem [#allocation10], 64
        %v533 = vld [vmem:[%s532] sm:$0xf]
        %v534 = vld [vmem:[%s532 + $0x4] sm:$0xf]
        %v535 = vld [vmem:[%s532 + $0x8] sm:$0xf]
        %v536 = vld [vmem:[%s532 + $0xc] sm:$0xf]
        %v537 = vld [vmem:[%s532 + $0x10] sm:$0xf]
        %v538 = vld [vmem:[%s532 + $0x14] sm:$0xf]
        %v539 = vld [vmem:[%s532 + $0x18] sm:$0xf]
        %v540 = vld [vmem:[%s532 + $0x1c] sm:$0xf]
        %v541 = vld [vmem:[%s532 + $0x20] sm:$0xf]
        %v542 = vld [vmem:[%s532 + $0x24] sm:$0xf]
        %v543 = vld [vmem:[%s532 + $0x28] sm:$0xf]
        %v544 = vld [vmem:[%s532 + $0x2c] sm:$0xf]
        %v545 = vld [vmem:[%s532 + $0x30] sm:$0xf]
        %v546 = vld [vmem:[%s532 + $0x34] sm:$0xf]
        %v547 = vld [vmem:[%s532 + $0x38] sm:$0xf]
        %v548 = vld [vmem:[%s532 + $0x3c] sm:$0xf]
        %vm549 = vsmask.f32 7424
        %v551 = vshrl.u32 %v423, 16
        %v553 = vshll.u32 %v423, 16
        %v555 = vrot.slane %v553, 1
        %v556 = vor.u32 %v551, %v555
        %v558 = vshll.u32 %v424, 16
        %v560 = vrot.slane %v558, 1
        %v561 = vsel %vm549, %v556, %v560
        %v562 = vshrl.u32 %v424, 16
        %v564 = vor.u32 %v562, %v560
        %v583 = vunpack.c.l.b16 %v533
        %v584 = vunpack.c.l.b16 %v534
        %v585 = vunpack.c.l.b16 %v535
        %v586 = vunpack.c.l.b16 %v536
        %v587 = vunpack.c.l.b16 %v537
        %v588 = vunpack.c.l.b16 %v538
        %v589 = vunpack.c.l.b16 %v539
        %v590 = vunpack.c.l.b16 %v540
        %v591 = vunpack.c.l.b16 %v541
        %v592 = vunpack.c.l.b16 %v542
        %v593 = vunpack.c.l.b16 %v543
        %v594 = vunpack.c.l.b16 %v544
        %v595 = vunpack.c.l.b16 %v545
        %v596 = vunpack.c.l.b16 %v546
        %v597 = vunpack.c.l.b16 %v547
        %v598 = vunpack.c.l.b16 %v548
        %v599 = vpack.c.b16 %v584, %v583
        %v600 = vpack.c.b16 %v586, %v585
        %v601 = vpack.c.b16 %v588, %v587
        %v602 = vpack.c.b16 %v590, %v589
        %v603 = vpack.c.b16 %v592, %v591
        %v604 = vpack.c.b16 %v594, %v593
        %v605 = vpack.c.b16 %v596, %v595
        %v606 = vpack.c.b16 %v598, %v597
        %615 = vmatprep.subr.bf16.mxu0 0
        %616 = vmatpush1.bf16.msra.mxu0 %v606
        %617 = vmatprep.subr.bf16.mxu0 0
        %618 = vmatpush1.bf16.msra.mxu0 %v605
        %619 = vmatprep.subr.bf16.mxu0 0
        %620 = vmatpush1.bf16.msra.mxu0 %v604
        %621 = vmatprep.subr.bf16.mxu0 0
        %622 = vmatpush1.bf16.msra.mxu0 %v603
        %623 = vmatprep.subr.bf16.mxu0 0
        %624 = vmatpush1.bf16.msra.mxu0 %v602
        %625 = vmatprep.subr.bf16.mxu0 0
        %626 = vmatpush1.bf16.msra.mxu0 %v601
        %627 = vmatprep.subr.bf16.mxu0 0
        %628 = vmatpush1.bf16.msra.mxu0 %v600
        %629 = vmatprep.subr.bf16.mxu0 0
        %630 = vmatpush1.bf16.msra.mxu0 %v599
        %631 = vmatprep.subr.bf16.mxu0 0
        %632 = vmatpush2.bf16.msra.mxu0 0
        %633 = vmatprep.subr.bf16.mxu0 0
        %634 = vmatpush2.bf16.msra.mxu0 0
        %635 = vmatprep.subr.bf16.mxu0 0
        %636 = vmatpush2.bf16.msra.mxu0 0
        %637 = vmatprep.subr.bf16.mxu0 0
        %638 = vmatpush2.bf16.msra.mxu0 0
        %639 = vmatprep.subr.bf16.mxu0 0
        %640 = vmatpush2.bf16.msra.mxu0 0
        %641 = vmatprep.subr.bf16.mxu0 0
        %642 = vmatpush2.bf16.msra.mxu0 0
        %643 = vmatprep.subr.bf16.mxu0 0
        %644 = vmatpush2.bf16.msra.mxu0 0
        %645 = vmatprep.subr.bf16.mxu0 0
        %646 = vmatpush2.bf16.msra.mxu0 0
        %647 = vmatprep.mubr.bf16.mxu0 0
        %648 = vmatmul.mubr.bf16.gmra.mxu0 %v561
        %v649 = vpop.f32.mrf.mxu0
        %v650 = vadd.f32 0.0, %v649
        %v651 = vpop.f32.mrf.mxu0
        %v652 = vpop.f32.mrf.mxu0
        %v653 = vadd.f32 0.0, %v652
        %v654 = vpop.f32.mrf.mxu0
        %655 = vmatprep.mubr.bf16.mxu0 0
        %656 = vmatmul.mubr.bf16.gmra.mxu0 %v564
        %v657 = vpop.f32.mrf.mxu0
        %v658 = vadd.f32 0.0, %v657
        %v659 = vpop.f32.mrf.mxu0
        %v660 = vpop.f32.mrf.mxu0
        %v661 = vpop.f32.mrf.mxu0
        %662 = vdwg.mxu0
        %v663 = vadd.f32 %v529, %v650
        %v664 = vadd.f32 %v530, %v653
        %v665 = vadd.f32 %v531, %v658
        %666 = vst [vmem:[#allocation3] sm:$0xff] %v663
        %667 = vst [vmem:[#allocation3 + $0x8] sm:$0xff] %v664
        %668 = vst [vmem:[#allocation3 + $0x10] sm:$0x3] %v665
        %v669 = vld [vmem:[#allocation3] sm:$0xff]
        %v670 = vld [vmem:[#allocation3 + $0x8] sm:$0xff]
        %v671 = vld [vmem:[#allocation3 + $0x10] sm:$0x3]
        %s672 = scalar_lea.vmem [#allocation10], 128
        %v673 = vld [vmem:[%s672] sm:$0xf]
        %v674 = vld [vmem:[%s672 + $0x4] sm:$0xf]
        %v675 = vld [vmem:[%s672 + $0x8] sm:$0xf]
        %v676 = vld [vmem:[%s672 + $0xc] sm:$0xf]
        %v677 = vld [vmem:[%s672 + $0x10] sm:$0xf]
        %v678 = vld [vmem:[%s672 + $0x14] sm:$0xf]
        %v679 = vld [vmem:[%s672 + $0x18] sm:$0xf]
        %v680 = vld [vmem:[%s672 + $0x1c] sm:$0xf]
        %v681 = vld [vmem:[%s672 + $0x20] sm:$0xf]
        %v682 = vld [vmem:[%s672 + $0x24] sm:$0xf]
        %v683 = vld [vmem:[%s672 + $0x28] sm:$0xf]
        %v684 = vld [vmem:[%s672 + $0x2c] sm:$0xf]
        %v685 = vld [vmem:[%s672 + $0x30] sm:$0xf]
        %v686 = vld [vmem:[%s672 + $0x34] sm:$0xf]
        %v687 = vld [vmem:[%s672 + $0x38] sm:$0xf]
        %v688 = vld [vmem:[%s672 + $0x3c] sm:$0xf]
        %vm689 = vcmask 1046528
        %v690 = vrot.slane %v423, 1
        %v691 = vrot.slane %v424, 1
        %v692 = vsel %vm689, %v690, %v691
        %v711 = vunpack.c.l.b16 %v673
        %v712 = vunpack.c.l.b16 %v674
        %v713 = vunpack.c.l.b16 %v675
        %v714 = vunpack.c.l.b16 %v676
        %v715 = vunpack.c.l.b16 %v677
        %v716 = vunpack.c.l.b16 %v678
        %v717 = vunpack.c.l.b16 %v679
        %v718 = vunpack.c.l.b16 %v680
        %v719 = vunpack.c.l.b16 %v681
        %v720 = vunpack.c.l.b16 %v682
        %v721 = vunpack.c.l.b16 %v683
        %v722 = vunpack.c.l.b16 %v684
        %v723 = vunpack.c.l.b16 %v685
        %v724 = vunpack.c.l.b16 %v686
        %v725 = vunpack.c.l.b16 %v687
        %v726 = vunpack.c.l.b16 %v688
        %v727 = vpack.c.b16 %v712, %v711
        %v728 = vpack.c.b16 %v714, %v713
        %v729 = vpack.c.b16 %v716, %v715
        %v730 = vpack.c.b16 %v718, %v717
        %v731 = vpack.c.b16 %v720, %v719
        %v732 = vpack.c.b16 %v722, %v721
        %v733 = vpack.c.b16 %v724, %v723
        %v734 = vpack.c.b16 %v726, %v725
        %743 = vmatprep.subr.bf16.mxu0 0
        %744 = vmatpush1.bf16.msra.mxu0 %v734
        %745 = vmatprep.subr.bf16.mxu0 0
        %746 = vmatpush1.bf16.msra.mxu0 %v733
        %747 = vmatprep.subr.bf16.mxu0 0
        %748 = vmatpush1.bf16.msra.mxu0 %v732
        %749 = vmatprep.subr.bf16.mxu0 0
        %750 = vmatpush1.bf16.msra.mxu0 %v731
        %751 = vmatprep.subr.bf16.mxu0 0
        %752 = vmatpush1.bf16.msra.mxu0 %v730
        %753 = vmatprep.subr.bf16.mxu0 0
        %754 = vmatpush1.bf16.msra.mxu0 %v729
        %755 = vmatprep.subr.bf16.mxu0 0
        %756 = vmatpush1.bf16.msra.mxu0 %v728
        %757 = vmatprep.subr.bf16.mxu0 0
        %758 = vmatpush1.bf16.msra.mxu0 %v727
        %759 = vmatprep.subr.bf16.mxu0 0
        %760 = vmatpush2.bf16.msra.mxu0 0
        %761 = vmatprep.subr.bf16.mxu0 0
        %762 = vmatpush2.bf16.msra.mxu0 0
        %763 = vmatprep.subr.bf16.mxu0 0
        %764 = vmatpush2.bf16.msra.mxu0 0
        %765 = vmatprep.subr.bf16.mxu0 0
        %766 = vmatpush2.bf16.msra.mxu0 0
        %767 = vmatprep.subr.bf16.mxu0 0
        %768 = vmatpush2.bf16.msra.mxu0 0
        %769 = vmatprep.subr.bf16.mxu0 0
        %770 = vmatpush2.bf16.msra.mxu0 0
        %771 = vmatprep.subr.bf16.mxu0 0
        %772 = vmatpush2.bf16.msra.mxu0 0
        %773 = vmatprep.subr.bf16.mxu0 0
        %774 = vmatpush2.bf16.msra.mxu0 0
        %775 = vmatprep.mubr.bf16.mxu0 0
        %776 = vmatmul.mubr.bf16.gmra.mxu0 %v692
        %v777 = vpop.f32.mrf.mxu0
        %v778 = vadd.f32 0.0, %v777
        %v779 = vpop.f32.mrf.mxu0
        %v780 = vpop.f32.mrf.mxu0
        %v781 = vadd.f32 0.0, %v780
        %v782 = vpop.f32.mrf.mxu0
        %783 = vmatprep.mubr.bf16.mxu0 0
        %784 = vmatmul.mubr.bf16.gmra.mxu0 %v691
        %v785 = vpop.f32.mrf.mxu0
        %v786 = vadd.f32 0.0, %v785
        %v787 = vpop.f32.mrf.mxu0
        %v788 = vpop.f32.mrf.mxu0
        %v789 = vpop.f32.mrf.mxu0
        %790 = vdwg.mxu0
        %v791 = vadd.f32 %v669, %v778
        %v792 = vadd.f32 %v670, %v781
        %v793 = vadd.f32 %v671, %v786
        %794 = vst [vmem:[#allocation3] sm:$0xff] %v791
        %795 = vst [vmem:[#allocation3 + $0x8] sm:$0xff] %v792
        %796 = vst [vmem:[#allocation3 + $0x10] sm:$0x3] %v793
        %v797 = vld [vmem:[#allocation3] sm:$0xff]
        %v798 = vld [vmem:[#allocation3 + $0x8] sm:$0xff]
        %v799 = vld [vmem:[#allocation3 + $0x10] sm:$0x3]
        %v800 = vmax.f32 %v797, 0.0
        %v801 = vmax.f32 %v798, 0.0
        %v802 = vmax.f32 %v799, 0.0
        %v803 = vlaneseq
        %v804 = vshrl.u32 %v803, 7
        %v805 = vadd.s32 %v804, 8
        %v806 = vadd.s32 %v804, 16
        %s807 = smul.u32 %s32, 16
        %s808 = ssub.s32 %s807, 1
        %v809 = vstv %s808
        %v810 = vadd.s32 %v809, %v804
        %v811 = vadd.s32 %v809, %v805
        %v812 = vadd.s32 %v809, %v806
        %vm813 = vcmp.ge.s32.totalorder %v810, 0
        %vm814 = vcmp.ge.s32.totalorder %v811, 0
        %vm815 = vcmp.ge.s32.totalorder %v812, 0
        %vm816 = vcmp.lt.s32.totalorder %v810, 16
        %vm817 = vcmp.lt.s32.totalorder %v811, 16
        %vm818 = vcmp.lt.s32.totalorder %v812, 16
        %vm819 = vmand %vm813, %vm816
        %vm820 = vmand %vm814, %vm817
        %vm821 = vmand %vm815, %vm818
        %v822 = vsel %vm819, 1, 0
        %v823 = vsel %vm820, 1, 0
        %v824 = vsel %vm821, 1, 0
        %vm825 = vcmp.eq.s32.totalorder %v822, 1
        %vm826 = vcmp.eq.s32.totalorder %v823, 1
        %vm827 = vcmp.eq.s32.totalorder %v824, 1
        %v828 = vsel %vm825, %v800, 0.0
        %v829 = vsel %vm826, %v801, 0.0
        %v830 = vsel %vm827, %v802, 0.0
        %v831 = vpack.c.bf16 %v829, %v828
        %v832 = vpack.c.bf16 %v830, %v830
        %v833 = vld [vmem:[%s5] sm:$0x1]
        %v835 = vlaneseq
        %v836 = vshrl.u32 %v835, 7
        %v837 = vsub.s32 0, %v836
        %v838 = vrot.slane %v833, %v837
        %840 = vst [vmem:[#allocation4] sm:$0xff] %v838
        %841 = vst [vmem:[#allocation4 + $0x8] sm:$0xff] %v838
        %v842 = vld [vmem:[#allocation4] sm:$0xff]
        %v843 = vld [vmem:[#allocation4 + $0x8] sm:$0xff]
        %v844 = vld [vmem:[#allocation11] sm:$0xf]
        %v845 = vld [vmem:[#allocation11 + $0x4] sm:$0xf]
        %v846 = vld [vmem:[#allocation11 + $0x8] sm:$0xf]
        %v847 = vld [vmem:[#allocation11 + $0xc] sm:$0xf]
        %v848 = vld [vmem:[#allocation11 + $0x10] sm:$0xf]
        %v849 = vld [vmem:[#allocation11 + $0x14] sm:$0xf]
        %v850 = vld [vmem:[#allocation11 + $0x18] sm:$0xf]
        %v851 = vld [vmem:[#allocation11 + $0x1c] sm:$0xf]
        %v852 = vld [vmem:[#allocation11 + $0x20] sm:$0xf]
        %v853 = vld [vmem:[#allocation11 + $0x24] sm:$0xf]
        %v854 = vld [vmem:[#allocation11 + $0x28] sm:$0xf]
        %v855 = vld [vmem:[#allocation11 + $0x2c] sm:$0xf]
        %v856 = vld [vmem:[#allocation11 + $0x30] sm:$0xf]
        %v857 = vld [vmem:[#allocation11 + $0x34] sm:$0xf]
        %v858 = vld [vmem:[#allocation11 + $0x38] sm:$0xf]
        %v859 = vld [vmem:[#allocation11 + $0x3c] sm:$0xf]
        %v876 = vunpack.c.l.b16 %v844
        %v877 = vunpack.c.l.b16 %v845
        %v878 = vunpack.c.l.b16 %v846
        %v879 = vunpack.c.l.b16 %v847
        %v880 = vunpack.c.l.b16 %v848
        %v881 = vunpack.c.l.b16 %v849
        %v882 = vunpack.c.l.b16 %v850
        %v883 = vunpack.c.l.b16 %v851
        %v884 = vunpack.c.l.b16 %v852
        %v885 = vunpack.c.l.b16 %v853
        %v886 = vunpack.c.l.b16 %v854
        %v887 = vunpack.c.l.b16 %v855
        %v888 = vunpack.c.l.b16 %v856
        %v889 = vunpack.c.l.b16 %v857
        %v890 = vunpack.c.l.b16 %v858
        %v891 = vunpack.c.l.b16 %v859
        %v892 = vpack.c.b16 %v877, %v876
        %v893 = vpack.c.b16 %v879, %v878
        %v894 = vpack.c.b16 %v881, %v880
        %v895 = vpack.c.b16 %v883, %v882
        %v896 = vpack.c.b16 %v885, %v884
        %v897 = vpack.c.b16 %v887, %v886
        %v898 = vpack.c.b16 %v889, %v888
        %v899 = vpack.c.b16 %v891, %v890
        %908 = vmatprep.subr.bf16.mxu0 0
        %909 = vmatpush1.bf16.msra.mxu0 %v899
        %910 = vmatprep.subr.bf16.mxu0 0
        %911 = vmatpush1.bf16.msra.mxu0 %v898
        %912 = vmatprep.subr.bf16.mxu0 0
        %913 = vmatpush1.bf16.msra.mxu0 %v897
        %914 = vmatprep.subr.bf16.mxu0 0
        %915 = vmatpush1.bf16.msra.mxu0 %v896
        %916 = vmatprep.subr.bf16.mxu0 0
        %917 = vmatpush1.bf16.msra.mxu0 %v895
        %918 = vmatprep.subr.bf16.mxu0 0
        %919 = vmatpush1.bf16.msra.mxu0 %v894
        %920 = vmatprep.subr.bf16.mxu0 0
        %921 = vmatpush1.bf16.msra.mxu0 %v893
        %922 = vmatprep.subr.bf16.mxu0 0
        %923 = vmatpush1.bf16.msra.mxu0 %v892
        %924 = vmatprep.subr.bf16.mxu0 0
        %925 = vmatpush2.bf16.msra.mxu0 0
        %926 = vmatprep.subr.bf16.mxu0 0
        %927 = vmatpush2.bf16.msra.mxu0 0
        %928 = vmatprep.subr.bf16.mxu0 0
        %929 = vmatpush2.bf16.msra.mxu0 0
        %930 = vmatprep.subr.bf16.mxu0 0
        %931 = vmatpush2.bf16.msra.mxu0 0
        %932 = vmatprep.subr.bf16.mxu0 0
        %933 = vmatpush2.bf16.msra.mxu0 0
        %934 = vmatprep.subr.bf16.mxu0 0
        %935 = vmatpush2.bf16.msra.mxu0 0
        %936 = vmatprep.subr.bf16.mxu0 0
        %937 = vmatpush2.bf16.msra.mxu0 0
        %938 = vmatprep.subr.bf16.mxu0 0
        %939 = vmatpush2.bf16.msra.mxu0 0
        %940 = vmatprep.mubr.bf16.mxu0 0
        %941 = vmatmul.mubr.bf16.gmra.mxu0 %v831
        %v942 = vpop.f32.mrf.mxu0
        %v943 = vadd.f32 0.0, %v942
        %v944 = vpop.f32.mrf.mxu0
        %v945 = vpop.f32.mrf.mxu0
        %v946 = vadd.f32 0.0, %v945
        %v947 = vpop.f32.mrf.mxu0
        %948 = vdwg.mxu0
        %v949 = vadd.f32 %v842, %v943
        %v950 = vadd.f32 %v843, %v946
        %951 = vst [vmem:[#allocation4] sm:$0xff] %v949
        %952 = vst [vmem:[#allocation4 + $0x8] sm:$0xff] %v950
        %v953 = vld [vmem:[#allocation4] sm:$0xff]
        %v954 = vld [vmem:[#allocation4 + $0x8] sm:$0xff]
        %s955 = scalar_lea.vmem [#allocation11], 64
        %v956 = vld [vmem:[%s955] sm:$0xf]
        %v957 = vld [vmem:[%s955 + $0x4] sm:$0xf]
        %v958 = vld [vmem:[%s955 + $0x8] sm:$0xf]
        %v959 = vld [vmem:[%s955 + $0xc] sm:$0xf]
        %v960 = vld [vmem:[%s955 + $0x10] sm:$0xf]
        %v961 = vld [vmem:[%s955 + $0x14] sm:$0xf]
        %v962 = vld [vmem:[%s955 + $0x18] sm:$0xf]
        %v963 = vld [vmem:[%s955 + $0x1c] sm:$0xf]
        %v964 = vld [vmem:[%s955 + $0x20] sm:$0xf]
        %v965 = vld [vmem:[%s955 + $0x24] sm:$0xf]
        %v966 = vld [vmem:[%s955 + $0x28] sm:$0xf]
        %v967 = vld [vmem:[%s955 + $0x2c] sm:$0xf]
        %v968 = vld [vmem:[%s955 + $0x30] sm:$0xf]
        %v969 = vld [vmem:[%s955 + $0x34] sm:$0xf]
        %v970 = vld [vmem:[%s955 + $0x38] sm:$0xf]
        %v971 = vld [vmem:[%s955 + $0x3c] sm:$0xf]
        %v973 = vshrl.u32 %v831, 16
        %v975 = vshll.u32 %v831, 16
        %v977 = vrot.slane %v975, 1
        %v978 = vor.u32 %v973, %v977
        %v980 = vshll.u32 %v832, 16
        %v982 = vrot.slane %v980, 1
        %v983 = vsel %vm549, %v978, %v982
        %v1001 = vunpack.c.l.b16 %v956
        %v1002 = vunpack.c.l.b16 %v957
        %v1003 = vunpack.c.l.b16 %v958
        %v1004 = vunpack.c.l.b16 %v959
        %v1005 = vunpack.c.l.b16 %v960
        %v1006 = vunpack.c.l.b16 %v961
        %v1007 = vunpack.c.l.b16 %v962
        %v1008 = vunpack.c.l.b16 %v963
        %v1009 = vunpack.c.l.b16 %v964
        %v1010 = vunpack.c.l.b16 %v965
        %v1011 = vunpack.c.l.b16 %v966
        %v1012 = vunpack.c.l.b16 %v967
        %v1013 = vunpack.c.l.b16 %v968
        %v1014 = vunpack.c.l.b16 %v969
        %v1015 = vunpack.c.l.b16 %v970
        %v1016 = vunpack.c.l.b16 %v971
        %v1017 = vpack.c.b16 %v1002, %v1001
        %v1018 = vpack.c.b16 %v1004, %v1003
        %v1019 = vpack.c.b16 %v1006, %v1005
        %v1020 = vpack.c.b16 %v1008, %v1007
        %v1021 = vpack.c.b16 %v1010, %v1009
        %v1022 = vpack.c.b16 %v1012, %v1011
        %v1023 = vpack.c.b16 %v1014, %v1013
        %v1024 = vpack.c.b16 %v1016, %v1015
        %1033 = vmatprep.subr.bf16.mxu0 0
        %1034 = vmatpush1.bf16.msra.mxu0 %v1024
        %1035 = vmatprep.subr.bf16.mxu0 0
        %1036 = vmatpush1.bf16.msra.mxu0 %v1023
        %1037 = vmatprep.subr.bf16.mxu0 0
        %1038 = vmatpush1.bf16.msra.mxu0 %v1022
        %1039 = vmatprep.subr.bf16.mxu0 0
        %1040 = vmatpush1.bf16.msra.mxu0 %v1021
        %1041 = vmatprep.subr.bf16.mxu0 0
        %1042 = vmatpush1.bf16.msra.mxu0 %v1020
        %1043 = vmatprep.subr.bf16.mxu0 0
        %1044 = vmatpush1.bf16.msra.mxu0 %v1019
        %1045 = vmatprep.subr.bf16.mxu0 0
        %1046 = vmatpush1.bf16.msra.mxu0 %v1018
        %1047 = vmatprep.subr.bf16.mxu0 0
        %1048 = vmatpush1.bf16.msra.mxu0 %v1017
        %1049 = vmatprep.subr.bf16.mxu0 0
        %1050 = vmatpush2.bf16.msra.mxu0 0
        %1051 = vmatprep.subr.bf16.mxu0 0
        %1052 = vmatpush2.bf16.msra.mxu0 0
        %1053 = vmatprep.subr.bf16.mxu0 0
        %1054 = vmatpush2.bf16.msra.mxu0 0
        %1055 = vmatprep.subr.bf16.mxu0 0
        %1056 = vmatpush2.bf16.msra.mxu0 0
        %1057 = vmatprep.subr.bf16.mxu0 0
        %1058 = vmatpush2.bf16.msra.mxu0 0
        %1059 = vmatprep.subr.bf16.mxu0 0
        %1060 = vmatpush2.bf16.msra.mxu0 0
        %1061 = vmatprep.subr.bf16.mxu0 0
        %1062 = vmatpush2.bf16.msra.mxu0 0
        %1063 = vmatprep.subr.bf16.mxu0 0
        %1064 = vmatpush2.bf16.msra.mxu0 0
        %1065 = vmatprep.mubr.bf16.mxu0 0
        %1066 = vmatmul.mubr.bf16.gmra.mxu0 %v983
        %v1067 = vpop.f32.mrf.mxu0
        %v1068 = vadd.f32 0.0, %v1067
        %v1069 = vpop.f32.mrf.mxu0
        %v1070 = vpop.f32.mrf.mxu0
        %v1071 = vadd.f32 0.0, %v1070
        %v1072 = vpop.f32.mrf.mxu0
        %1073 = vdwg.mxu0
        %v1074 = vadd.f32 %v953, %v1068
        %v1075 = vadd.f32 %v954, %v1071
        %1076 = vst [vmem:[#allocation4] sm:$0xff] %v1074
        %1077 = vst [vmem:[#allocation4 + $0x8] sm:$0xff] %v1075
        %v1078 = vld [vmem:[#allocation4] sm:$0xff]
        %v1079 = vld [vmem:[#allocation4 + $0x8] sm:$0xff]
        %s1080 = scalar_lea.vmem [#allocation11], 128
        %v1081 = vld [vmem:[%s1080] sm:$0xf]
        %v1082 = vld [vmem:[%s1080 + $0x4] sm:$0xf]
        %v1083 = vld [vmem:[%s1080 + $0x8] sm:$0xf]
        %v1084 = vld [vmem:[%s1080 + $0xc] sm:$0xf]
        %v1085 = vld [vmem:[%s1080 + $0x10] sm:$0xf]
        %v1086 = vld [vmem:[%s1080 + $0x14] sm:$0xf]
        %v1087 = vld [vmem:[%s1080 + $0x18] sm:$0xf]
        %v1088 = vld [vmem:[%s1080 + $0x1c] sm:$0xf]
        %v1089 = vld [vmem:[%s1080 + $0x20] sm:$0xf]
        %v1090 = vld [vmem:[%s1080 + $0x24] sm:$0xf]
        %v1091 = vld [vmem:[%s1080 + $0x28] sm:$0xf]
        %v1092 = vld [vmem:[%s1080 + $0x2c] sm:$0xf]
        %v1093 = vld [vmem:[%s1080 + $0x30] sm:$0xf]
        %v1094 = vld [vmem:[%s1080 + $0x34] sm:$0xf]
        %v1095 = vld [vmem:[%s1080 + $0x38] sm:$0xf]
        %v1096 = vld [vmem:[%s1080 + $0x3c] sm:$0xf]
        %v1099 = vrot.slane %v831, 1
        %v1100 = vrot.slane %v832, 1
        %v1101 = vsel %vm689, %v1099, %v1100
        %v1119 = vunpack.c.l.b16 %v1081
        %v1120 = vunpack.c.l.b16 %v1082
        %v1121 = vunpack.c.l.b16 %v1083
        %v1122 = vunpack.c.l.b16 %v1084
        %v1123 = vunpack.c.l.b16 %v1085
        %v1124 = vunpack.c.l.b16 %v1086
        %v1125 = vunpack.c.l.b16 %v1087
        %v1126 = vunpack.c.l.b16 %v1088
        %v1127 = vunpack.c.l.b16 %v1089
        %v1128 = vunpack.c.l.b16 %v1090
        %v1129 = vunpack.c.l.b16 %v1091
        %v1130 = vunpack.c.l.b16 %v1092
        %v1131 = vunpack.c.l.b16 %v1093
        %v1132 = vunpack.c.l.b16 %v1094
        %v1133 = vunpack.c.l.b16 %v1095
        %v1134 = vunpack.c.l.b16 %v1096
        %v1135 = vpack.c.b16 %v1120, %v1119
        %v1136 = vpack.c.b16 %v1122, %v1121
        %v1137 = vpack.c.b16 %v1124, %v1123
        %v1138 = vpack.c.b16 %v1126, %v1125
        %v1139 = vpack.c.b16 %v1128, %v1127
        %v1140 = vpack.c.b16 %v1130, %v1129
        %v1141 = vpack.c.b16 %v1132, %v1131
        %v1142 = vpack.c.b16 %v1134, %v1133
        %1151 = vmatprep.subr.bf16.mxu0 0
        %1152 = vmatpush1.bf16.msra.mxu0 %v1142
        %1153 = vmatprep.subr.bf16.mxu0 0
        %1154 = vmatpush1.bf16.msra.mxu0 %v1141
        %1155 = vmatprep.subr.bf16.mxu0 0
        %1156 = vmatpush1.bf16.msra.mxu0 %v1140
        %1157 = vmatprep.subr.bf16.mxu0 0
        %1158 = vmatpush1.bf16.msra.mxu0 %v1139
        %1159 = vmatprep.subr.bf16.mxu0 0
        %1160 = vmatpush1.bf16.msra.mxu0 %v1138
        %1161 = vmatprep.subr.bf16.mxu0 0
        %1162 = vmatpush1.bf16.msra.mxu0 %v1137
        %1163 = vmatprep.subr.bf16.mxu0 0
        %1164 = vmatpush1.bf16.msra.mxu0 %v1136
        %1165 = vmatprep.subr.bf16.mxu0 0
        %1166 = vmatpush1.bf16.msra.mxu0 %v1135
        %1167 = vmatprep.subr.bf16.mxu0 0
        %1168 = vmatpush2.bf16.msra.mxu0 0
        %1169 = vmatprep.subr.bf16.mxu0 0
        %1170 = vmatpush2.bf16.msra.mxu0 0
        %1171 = vmatprep.subr.bf16.mxu0 0
        %1172 = vmatpush2.bf16.msra.mxu0 0
        %1173 = vmatprep.subr.bf16.mxu0 0
        %1174 = vmatpush2.bf16.msra.mxu0 0
        %1175 = vmatprep.subr.bf16.mxu0 0
        %1176 = vmatpush2.bf16.msra.mxu0 0
        %1177 = vmatprep.subr.bf16.mxu0 0
        %1178 = vmatpush2.bf16.msra.mxu0 0
        %1179 = vmatprep.subr.bf16.mxu0 0
        %1180 = vmatpush2.bf16.msra.mxu0 0
        %1181 = vmatprep.subr.bf16.mxu0 0
        %1182 = vmatpush2.bf16.msra.mxu0 0
        %1183 = vmatprep.mubr.bf16.mxu0 0
        %1184 = vmatmul.mubr.bf16.gmra.mxu0 %v1101
        %v1185 = vpop.f32.mrf.mxu0
        %v1186 = vadd.f32 0.0, %v1185
        %v1187 = vpop.f32.mrf.mxu0
        %v1188 = vpop.f32.mrf.mxu0
        %v1189 = vadd.f32 0.0, %v1188
        %v1190 = vpop.f32.mrf.mxu0
        %1191 = vdwg.mxu0
        %v1192 = vadd.f32 %v1078, %v1186
        %v1193 = vadd.f32 %v1079, %v1189
        %1194 = vst [vmem:[#allocation4] sm:$0xff] %v1192
        %1195 = vst [vmem:[#allocation4 + $0x8] sm:$0xff] %v1193
        %v1196 = vld [vmem:[#allocation4] sm:$0xff]
        %v1197 = vld [vmem:[#allocation4 + $0x8] sm:$0xff]
        %v1198 = vmax.f32 %v1196, 0.0
        %v1199 = vmax.f32 %v1197, 0.0
        %v1200 = vpack.c.bf16 %v1199, %v1198
        %v1202 = vunpack.c.l.b16 %v1200
        %v1203 = vunpack.c.h.b16 %v1200
        %v1204 = vpack.c.b16 %v1202, %v1202
        %v1205 = vpack.c.b16 %v1203, %v1203
        %1208 = vst [vmem:[%s369] sm:$0xf] %v1204
        %1209 = vst [vmem:[%s369 + $0x4] sm:$0xf] %v1205
        %s1210 = sand.u32 %s193, 1
        %s1211 = scalar_lea.sflag [#allocation7], %s1210
        %s1212 = sand.u32 %s193, 1
        %s1213 = smul.addr %s1212, 8
        %s1214 = scalar_lea.vmem [#allocation13], %s1213
        // Predicated region
        $region61: #{tpu_custom_call.1} parent=43 // pred_check
          %p1215 = pneg %p203
        $region62: #{tpu_custom_call.1} parent=43 // pred_check_branch
          %1217 = sbr.rel (%p1215) target = $region64
        $region63: #{tpu_custom_call.1} parent=43 // pred_region
          %s1218 = smul.u32 2, %s32
          %s1220 = ssub.s32 128, 128
          %1221 = vsyncadd %s1211, %s1220
          %s1222 = smul.addr %s31, 2
          %s1223 = sadd.s32 %s1218, %s1222
          %s1224 = smul.addr %s1223, 64
          %s1225 = scalar_lea.hbm %s6, %s1224
          %s1226 = sshll.u32 %s1214, 4
          %s1227 = int_to_ptr.vmem [resolvable:$true] %s1226
          %1232 = dma.vmem_to_hbm [thread:$0]  %s1227, 128, %s1225, %s1211, 64, 64, 4
        $region64: #{tpu_custom_call.1} parent=43 // pred_fallthru
          _
      $region44: #{tpu_custom_call.1} parent=5 // pred_fallthru
        _
      %p1233 = scmp.le.s32.totalorder 2, %s22
      // Predicated region
      $region65: #{tpu_custom_call.1} parent=5 // pred_check
        %p1234 = pneg %p1233
      $region66: #{tpu_custom_call.1} parent=5 // pred_check_branch
        %1236 = sbr.rel (%p1234) target = $region68
      $region67: #{tpu_custom_call.1} parent=5 // pred_region
        %s1237 = ssub.s32 %s22, 2
        // Predicated region
        $region69: #{tpu_custom_call.1} parent=67 // pred_check
          %p1238 = pneg %p209
        $region70: #{tpu_custom_call.1} parent=67 // pred_check_branch
          %1240 = sbr.rel (%p1238) target = $region72
        $region71: #{tpu_custom_call.1} parent=67 // pred_region
          %s1241 = sand.u32 %s194, 1
          %s1242 = scalar_lea.sflag [#allocation7], %s1241
          %s1243 = sand.u32 %s194, 1
          %s1244 = smul.addr %s1243, 8
          %s1245 = scalar_lea.vmem [#allocation13], %s1244
          %1246 = dma.done %s1242, 128
        $region72: #{tpu_custom_call.1} parent=67 // pred_fallthru
          _
      $region68: #{tpu_custom_call.1} parent=5 // pred_fallthru
        _
    $region6: #{tpu_custom_call.1} parent=1 // loop_footer
      %s26 = sadd.s32 1, %s22
    $region7: #{tpu_custom_call.1} parent=1 // loop_footer_branch
      %21 = sbr.rel target = $region3
    $region8: #{tpu_custom_call.1} parent=1 // loop_exit
      _
    %1247 = vsyncpa [#allocation6], 1
    %s1248 = scalar_lea.sflag [#allocation6], 1
    %1249 = vsyncpa %s1248, 1
    %1250 = vsyncpa [#allocation9], 1
    %s1251 = scalar_lea.sflag [#allocation9], 1
    %1252 = vsyncpa %s1251, 1
    %1253 = vsyncpa [#allocation12], 1
    %1254 = vsyncpa [#allocation7], 1
    %s1255 = scalar_lea.sflag [#allocation7], 1
    %1256 = vsyncpa %s1255, 1

</llo_original>
